<compile_context>
chip_gen: v5e
topology: v5e:2x2
jax: 0.10.0
libtpu: 0.0.40
codegen_flags: <defaults>
</compile_context>

<pallas_src>
import numpy as np
import jax
import jax.numpy as jnp
from jax import lax
from jax.experimental import pallas as pl
from jax.experimental.pallas import tpu as pltpu

# ---- small, module-consistent config -------------------------------------
BATCH = 2
N_ACTORS = 8
N_MOVING = 8
PREV_STEPS = 6
PRED_STEPS = 30
N_HID = 32
P2 = PREV_STEPS * 2      # 12
S2 = PRED_STEPS * 2      # 60


# ===========================================================================
# Fused kernel: 3x (AlexEncoder fwd, image=None) + box_index_2_ego_index +
# moving-actor selection + final_rel, all in one grid step.
# ===========================================================================
def _nmp_fused_kernel(prev_sets_ref, prev_actor_ref, mov_ref, coef_ref,
                      wa_ref, ba_ref, wb_ref, bb_ref, swap_ref,
                      frel_ref, relv_ref, relh_ref, relm_ref,
                      fpos_ref, posv_ref, posh_ref, posm_ref):
    nsets, bn, p2 = prev_sets_ref.shape          # (3, b*Nm, 12)
    b, na, nm3 = mov_ref.shape                   # (b, Na, 3*Nm)
    nm = nm3 // nsets
    s2 = swap_ref.shape[0]                       # 60

    rel_refs = (relv_ref, relh_ref, relm_ref)
    pos_refs = (posv_ref, posh_ref, posm_ref)

    # even lanes hold x, odd lanes hold y (interleaved torch layout)
    even_bn = jnp.bitwise_and(
        lax.broadcasted_iota(jnp.int32, (bn, s2), 1), 1) == 0

    # ---- per-set trajectory encoder (folded constants) -------------------
    pos_sets = []
    for s in range(nsets):
        prev = prev_sets_ref[s]                                          # [bn, 12]
        traj = jnp.dot(prev, wa_ref[s],
                       preferred_element_type=jnp.float32) + ba_ref[s]   # [bn, H]
        relpos = jnp.dot(traj, wb_ref[s],
                         preferred_element_type=jnp.float32) + bb_ref[s] # [bn, 2*s2]
        rel = relpos[:, :s2]                                             # pred_fc out
        cur_x = jnp.broadcast_to(prev[:, p2 - 2:p2 - 1], (bn, s2))
        cur_y = jnp.broadcast_to(prev[:, p2 - 1:p2], (bn, s2))
        pos = relpos[:, s2:] + jnp.where(even_bn, cur_x, cur_y)          # cumsum+cur
        rel_refs[s][...] = rel
        pos_refs[s][...] = pos
        pos_sets.append(pos)

    # ---- reorder rows to (batch, set, actor) to match mov columns --------
    rows = []
    for bi in range(b):
        for s in range(nsets):
            rows.append(pos_sets[s][bi * nm:(bi + 1) * nm, :])
    pos_bm = jnp.concatenate(rows, axis=0)                               # [b*nm3, s2]

    # ---- box -> ego affine (pre-composed 2x2 + bias per actor) -----------
    r = b * nm3
    coef = coef_ref[...]                                                 # [r, 6]
    even_r = jnp.bitwise_and(
        lax.broadcasted_iota(jnp.int32, (r, s2), 1), 1) == 0

    def col(k):
        return jnp.broadcast_to(coef[:, k:k + 1], (r, s2))

    a_diag = jnp.where(even_r, col(0), col(3))      # a00 on x-lanes, a11 on y-lanes
    a_off = jnp.where(even_r, col(1), col(2))       # a01 on x-lanes, a10 on y-lanes
    c_add = jnp.where(even_r, col(4), col(5))       # cx / cy
    swapped = jnp.dot(pos_bm, swap_ref[...],
                      preferred_element_type=jnp.float32)                # pairwise swap
    ego = a_diag * pos_bm + a_off * swapped + c_add                      # [r, s2]

    # ---- moving-actor selection + final_rel ------------------------------
    for bi in range(b):
        ego_b = ego[bi * nm3:(bi + 1) * nm3, :]                          # [nm3, s2]
        fpos_b = jnp.dot(mov_ref[bi], ego_b,
                         preferred_element_type=jnp.float32)             # [Na, s2]
        cur_b = prev_actor_ref[bi][:, p2 - 2:p2]                         # [Na, 2]
        frel_b = fpos_b - jnp.concatenate([cur_b, fpos_b[:, :s2 - 2]], axis=1)
        fpos_ref[bi] = fpos_b
        frel_ref[bi] = frel_b


def nmp_fused(prev_sets, prev_actor, mov, coef, wa, ba, wb, bb, swap):
    nsets, bn, p2 = prev_sets.shape
    b, na, nm3 = mov.shape
    s2 = swap.shape[0]
    f32 = jnp.float32

    def full(a):
        return pl.BlockSpec(a.shape, lambda i, nd=a.ndim: (0,) * nd)

    spec2 = lambda r, c: pl.BlockSpec((r, c), lambda i: (0, 0))
    spec3 = lambda d, r, c: pl.BlockSpec((d, r, c), lambda i: (0, 0, 0))

    out_specs = (spec3(b, na, s2),                     # final_rel
                 spec2(bn, s2), spec2(bn, s2), spec2(bn, s2),
                 spec3(b, na, s2),                     # final_pos
                 spec2(bn, s2), spec2(bn, s2), spec2(bn, s2))
    out_shape = (jax.ShapeDtypeStruct((b, na, s2), f32),
                 jax.ShapeDtypeStruct((bn, s2), f32),
                 jax.ShapeDtypeStruct((bn, s2), f32),
                 jax.ShapeDtypeStruct((bn, s2), f32),
                 jax.ShapeDtypeStruct((b, na, s2), f32),
                 jax.ShapeDtypeStruct((bn, s2), f32),
                 jax.ShapeDtypeStruct((bn, s2), f32),
                 jax.ShapeDtypeStruct((bn, s2), f32))

    return pl.pallas_call(
        _nmp_fused_kernel,
        grid=(1,),
        in_specs=[full(prev_sets), full(prev_actor), full(mov), full(coef),
                  full(wa), full(ba), full(wb), full(bb), full(swap)],
        out_specs=out_specs,
        out_shape=out_shape,
        compiler_params=pltpu.CompilerParams(dimension_semantics=("arbitrary",)),
    )(prev_sets, prev_actor, mov, coef, wa, ba, wb, bb, swap)


# ===========================================================================
# Parameters / constant folding
# ===========================================================================
def build_constants():
    D = np.zeros((P2, P2), np.float32)           # rel_pos diff (first step = 0)
    for t in range(1, PREV_STEPS):
        for c in range(2):
            D[t * 2 + c, t * 2 + c] = 1.0
            D[(t - 1) * 2 + c, t * 2 + c] = -1.0
    M = np.zeros((S2, S2), np.float32)           # per-coordinate cumsum (interleaved)
    for s in range(PRED_STEPS):
        for sp in range(s + 1):
            for c in range(2):
                M[sp * 2 + c, s * 2 + c] = 1.0
    Swap = np.zeros((S2, S2), np.float32)        # pairwise (x,y) lane swap
    for s in range(PRED_STEPS):
        Swap[2 * s, 2 * s + 1] = 1.0
        Swap[2 * s + 1, 2 * s] = 1.0
    return jnp.asarray(D), jnp.asarray(M), jnp.asarray(Swap)


def init_params(key):
    params = {}
    for name in ("V_enc", "H_enc", "M_enc"):
        key, k1, k2 = jax.random.split(key, 3)
        params[name] = {
            "W1": jax.random.normal(k1, (P2, N_HID), jnp.float32) * 0.05,
            "b1": jnp.full((1, N_HID), 0.1, jnp.float32),
            "W2": jax.random.normal(k2, (N_HID, S2), jnp.float32) * 0.05,
            "b2": jnp.full((1, S2), 0.1, jnp.float32),
        }
    return params


def pack_params(params):
    """One-time fold of constant diff/cumsum matrices into the weights."""
    D, M, Swap = build_constants()
    wa, ba, wb, bb = [], [], [], []
    for name in ("V_enc", "H_enc", "M_enc"):
        p = params[name]
        wa.append(D @ p["W1"])                                    # [12, H]
        ba.append(p["b1"])                                        # [1, H]
        wb.append(jnp.concatenate([p["W2"], p["W2"] @ M], axis=1))  # [H, 120]
        bb.append(jnp.concatenate([p["b2"], p["b2"] @ M], axis=1))  # [1, 120]
    return {"wa": jnp.stack(wa), "ba": jnp.stack(ba),
            "wb": jnp.stack(wb), "bb": jnp.stack(bb), "swap": Swap}


# ===========================================================================
# Forward (use_nmp=False path of NMPEncoder.forward)
# ===========================================================================
def nmp_encoder_forward(prev_actor_centers, ego_translation, ego_rotation,
                        v_input, h_input, m_input, packed):
    b, Na, P, _ = prev_actor_centers.shape
    sets = (v_input, h_input, m_input)
    Nm = v_input[0].shape[1]

    prev_sets = jnp.stack([s[0].reshape(b * Nm, P * 2) for s in sets], axis=0)
    prev_actor = prev_actor_centers.reshape(b, Na, P * 2)
    mov = jnp.concatenate([s[3] for s in sets], axis=-1)              # [b, Na, 3Nm]

    # pre-compose the box->ego affine chain into per-actor 2x2 + bias:
    #   ego = (ego_R @ rot) @ pos + [249*(1 - rowsum(A)) - 5 * ego_R@(trans+ego_t)]
    rot_all = jnp.concatenate([s[2] for s in sets], axis=1)           # [b, 3Nm, 2, 2]
    trans_all = jnp.concatenate([s[1] for s in sets], axis=1)         # [b, 3Nm, 2]
    A = jnp.einsum('bij,bnjk->bnik', ego_rotation, rot_all)
    u = jnp.einsum('bij,bnj->bni', ego_rotation,
                   trans_all + ego_translation[:, None, :])
    cvec = 249.0 * (1.0 - A.sum(-1)) - 5.0 * u
    coef = jnp.concatenate([A.reshape(b, 3 * Nm, 4), cvec],
                           axis=-1).reshape(b * 3 * Nm, 6)

    (final_rel, rel_v, rel_h, rel_m,
     final_pos, pos_v, pos_h, pos_m) = nmp_fused(
        prev_sets, prev_actor, mov, coef,
        packed["wa"], packed["ba"], packed["wb"], packed["bb"], packed["swap"])
    return (final_rel, rel_v, rel_h, rel_m, final_pos, pos_v, pos_h, pos_m)


# ===========================================================================
# Pure-JAX reference (mirrors the PyTorch semantics) for verification
# ===========================================================================
def reference_forward(prev_actor_centers, ego_t, ego_R,
                      v_input, h_input, m_input, params):
    b, Na, P, _ = prev_actor_centers.shape
    S = PRED_STEPS

    def enc(prev_c, prm):
        Nm = prev_c.shape[1]
        BN = b * Nm
        prev = prev_c.reshape(BN, P, 2)
        rel_pos = jnp.concatenate(
            [jnp.zeros((BN, 1, 2), jnp.float32), prev[:, 1:] - prev[:, :-1]], axis=1)
        cur = jnp.broadcast_to(prev[:, -1][:, None, :], (BN, S, 2)).reshape(BN, -1)
        traj = rel_pos.reshape(BN, -1) @ prm["W1"] + prm["b1"]
        rel = traj @ prm["W2"] + prm["b2"]
        pos = jnp.cumsum(rel.reshape(BN, S, 2), axis=1).reshape(BN, -1) + cur
        return rel, pos

    def box2ego(pos, trans, rot, Nm):
        coord = pos.reshape(b, Nm, S, 2)
        coord = (249.0 - coord) / 5.0
        coord = coord[..., None]                                   # [b,Nm,S,2,1]
        coord = jnp.matmul(rot[:, :, None], coord)
        coord = coord + trans[:, :, None, :, None]
        coord = coord + ego_t[:, None, None, :, None]
        coord = jnp.matmul(ego_R[:, None, None], coord)
        ego = 249.0 - coord[..., 0] * 5.0
        return ego.reshape(b, Nm, S * 2)

    sets = [(v_input, params["V_enc"]), (h_input, params["H_enc"]),
            (m_input, params["M_enc"])]
    rels, poss, count = [], [], 0.0
    for (prev_c, trans, rot, mi), prm in sets:
        rel, pos = enc(prev_c, prm)
        rels.append(rel)
        poss.append(pos)
        count = count + jnp.matmul(mi, box2ego(pos, trans, rot, prev_c.shape[1]))
    current_loc = prev_actor_centers[:, :, -1, :]
    final_pos = count
    final_rel = final_pos - jnp.concatenate([current_loc, final_pos[:, :, :-2]],
                                            axis=-1)
    return (final_rel, rels[0], rels[1], rels[2],
            final_pos, poss[0], poss[1], poss[2])


# ===========================================================================
if __name__ == "__main__":
    key = jax.random.PRNGKey(0)
    key, kp = jax.random.split(key)
    params = init_params(kp)
    packed = pack_params(params)

    def make_set(k, Nm):
        k1, k2, k3, k4 = jax.random.split(k, 4)
        prev = jax.random.uniform(k1, (BATCH, Nm, PREV_STEPS, 2), jnp.float32,
                                  0.0, 500.0)
        trans = jax.random.normal(k2, (BATCH, Nm, 2), jnp.float32) * 10.0
        theta = jax.random.uniform(k3, (BATCH, Nm), jnp.float32, 0.0, 2 * np.pi)
        rot = jnp.stack([jnp.stack([jnp.cos(theta), -jnp.sin(theta)], -1),
                         jnp.stack([jnp.sin(theta), jnp.cos(theta)], -1)], -2)
        mi = (jax.random.uniform(k4, (BATCH, N_ACTORS, Nm)) < 0.3).astype(jnp.float32)
        return (prev, trans, rot, mi)

    key, ka, kv, kh, km, ke = jax.random.split(key, 6)
    prev_actor_centers = jax.random.uniform(
        ka, (BATCH, N_ACTORS, PREV_STEPS, 2), jnp.float32, 0.0, 500.0)
    v_input = make_set(kv, N_MOVING)
    h_input = make_set(kh, N_MOVING)
    m_input = make_set(km, N_MOVING)
    ke1, ke2 = jax.random.split(ke)
    ego_translation = jax.random.normal(ke1, (BATCH, 2), jnp.float32) * 10.0
    ang = jax.random.uniform(ke2, (BATCH,), jnp.float32, 0.0, 2 * np.pi)
    ego_rotation = jnp.stack([jnp.stack([jnp.cos(ang), -jnp.sin(ang)], -1),
                              jnp.stack([jnp.sin(ang), jnp.cos(ang)], -1)], -2)

    fwd = jax.jit(nmp_encoder_forward)
    outs = fwd(prev_actor_centers, ego_translation, ego_rotation,
               v_input, h_input, m_input, packed)
    outs = jax.block_until_ready(outs)

    ref = reference_forward(prev_actor_centers, ego_translation, ego_rotation,
                            v_input, h_input, m_input, params)
    # folded-constant / pre-composed-affine reassociation -> slightly looser atol
    for o, r in zip(outs, ref):
        np.testing.assert_allclose(np.asarray(o), np.asarray(r),
                                   rtol=3e-4, atol=0.1)
    print("KERNEL_OK")
</pallas_src>

<mosaic_0001>
module attributes {stable_mosaic.version = 11 : i64} {
  func.func @_nmp_fused_kernel(%arg0: i32, %arg1: memref<3x16x12xf32, #tpu.memory_space<vmem>>, %arg2: memref<2x8x12xf32, #tpu.memory_space<vmem>>, %arg3: memref<2x8x24xf32, #tpu.memory_space<vmem>>, %arg4: memref<48x6xf32, #tpu.memory_space<vmem>>, %arg5: memref<3x12x32xf32, #tpu.memory_space<vmem>>, %arg6: memref<3x1x32xf32, #tpu.memory_space<vmem>>, %arg7: memref<3x32x120xf32, #tpu.memory_space<vmem>>, %arg8: memref<3x1x120xf32, #tpu.memory_space<vmem>>, %arg9: memref<60x60xf32, #tpu.memory_space<vmem>>, %arg10: memref<2x8x60xf32, #tpu.memory_space<vmem>>, %arg11: memref<16x60xf32, #tpu.memory_space<vmem>>, %arg12: memref<16x60xf32, #tpu.memory_space<vmem>>, %arg13: memref<16x60xf32, #tpu.memory_space<vmem>>, %arg14: memref<2x8x60xf32, #tpu.memory_space<vmem>>, %arg15: memref<16x60xf32, #tpu.memory_space<vmem>>, %arg16: memref<16x60xf32, #tpu.memory_space<vmem>>, %arg17: memref<16x60xf32, #tpu.memory_space<vmem>>) attributes {dimension_semantics = [#tpu.dimension_semantics<arbitrary>], iteration_bounds = array<i64: 1>, scalar_prefetch = 0 : i64, scratch_operands = 0 : i64, tpu.core_type = #tpu.core_type<tc>, window_params = [{pipeline_mode = #tpu.pipeline_mode<synchronous>, transform_indices = @transform_0, window_bounds = array<i64: 3, 16, 12>}, {pipeline_mode = #tpu.pipeline_mode<synchronous>, transform_indices = @transform_1, window_bounds = array<i64: 2, 8, 12>}, {pipeline_mode = #tpu.pipeline_mode<synchronous>, transform_indices = @transform_2, window_bounds = array<i64: 2, 8, 24>}, {pipeline_mode = #tpu.pipeline_mode<synchronous>, transform_indices = @transform_3, window_bounds = array<i64: 48, 6>}, {pipeline_mode = #tpu.pipeline_mode<synchronous>, transform_indices = @transform_4, window_bounds = array<i64: 3, 12, 32>}, {pipeline_mode = #tpu.pipeline_mode<synchronous>, transform_indices = @transform_5, window_bounds = array<i64: 3, 1, 32>}, {pipeline_mode = #tpu.pipeline_mode<synchronous>, transform_indices = @transform_6, window_bounds = array<i64: 3, 32, 120>}, {pipeline_mode = #tpu.pipeline_mode<synchronous>, transform_indices = @transform_7, window_bounds = array<i64: 3, 1, 120>}, {pipeline_mode = #tpu.pipeline_mode<synchronous>, transform_indices = @transform_8, window_bounds = array<i64: 60, 60>}, {pipeline_mode = #tpu.pipeline_mode<synchronous>, transform_indices = @transform_9, window_bounds = array<i64: 2, 8, 60>}, {pipeline_mode = #tpu.pipeline_mode<synchronous>, transform_indices = @transform_10, window_bounds = array<i64: 16, 60>}, {pipeline_mode = #tpu.pipeline_mode<synchronous>, transform_indices = @transform_11, window_bounds = array<i64: 16, 60>}, {pipeline_mode = #tpu.pipeline_mode<synchronous>, transform_indices = @transform_12, window_bounds = array<i64: 16, 60>}, {pipeline_mode = #tpu.pipeline_mode<synchronous>, transform_indices = @transform_13, window_bounds = array<i64: 2, 8, 60>}, {pipeline_mode = #tpu.pipeline_mode<synchronous>, transform_indices = @transform_14, window_bounds = array<i64: 16, 60>}, {pipeline_mode = #tpu.pipeline_mode<synchronous>, transform_indices = @transform_15, window_bounds = array<i64: 16, 60>}, {pipeline_mode = #tpu.pipeline_mode<synchronous>, transform_indices = @transform_16, window_bounds = array<i64: 16, 60>}]} {
    %0 = tpu.iota {dimensions = array<i32: 1>} : vector<16x60xi32>
    %c1_i32 = arith.constant 1 : i32
    %1 = vector.broadcast %c1_i32 : i32 to vector<16x60xi32>
    %2 = arith.andi %0, %1 : vector<16x60xi32>
    %c0_i32 = arith.constant 0 : i32
    %3 = vector.broadcast %c0_i32 : i32 to vector<16x60xi32>
    %4 = arith.cmpi eq, %2, %3 : vector<16x60xi32>
    %c0 = arith.constant 0 : index
    %c0_0 = arith.constant 0 : index
    %c0_1 = arith.constant 0 : index
    %5 = vector.load %arg1[%c0, %c0_0, %c0_1] : memref<3x16x12xf32, #tpu.memory_space<vmem>>, vector<1x16x12xf32>
    %6 = vector.shape_cast %5 : vector<1x16x12xf32> to vector<16x12xf32>
    %c0_2 = arith.constant 0 : index
    %c0_3 = arith.constant 0 : index
    %c0_4 = arith.constant 0 : index
    %7 = vector.load %arg5[%c0_2, %c0_3, %c0_4] : memref<3x12x32xf32, #tpu.memory_space<vmem>>, vector<1x12x32xf32>
    %8 = vector.shape_cast %7 : vector<1x12x32xf32> to vector<12x32xf32>
    %cst = arith.constant dense<0.000000e+00> : vector<16x32xf32>
    %9 = tpu.matmul %6, %8, %cst {dimension_numbers = #tpu.dot_dimension_numbers<[1], [0], [0], [1], [0, 0, 1, 1], [], []>} : vector<16x12xf32>, vector<12x32xf32>, vector<16x32xf32> -> vector<16x32xf32>
    %c0_5 = arith.constant 0 : index
    %c0_6 = arith.constant 0 : index
    %c0_7 = arith.constant 0 : index
    %10 = vector.load %arg6[%c0_5, %c0_6, %c0_7] : memref<3x1x32xf32, #tpu.memory_space<vmem>>, vector<1x1x32xf32>
    %11 = vector.shape_cast %10 : vector<1x1x32xf32> to vector<1x32xf32>
    %12 = vector.broadcast %11 : vector<1x32xf32> to vector<16x32xf32>
    %13 = arith.addf %9, %12 : vector<16x32xf32>
    %c0_8 = arith.constant 0 : index
    %c0_9 = arith.constant 0 : index
    %c0_10 = arith.constant 0 : index
    %14 = vector.load %arg7[%c0_8, %c0_9, %c0_10] : memref<3x32x120xf32, #tpu.memory_space<vmem>>, vector<1x32x120xf32>
    %15 = vector.shape_cast %14 : vector<1x32x120xf32> to vector<32x120xf32>
    %cst_11 = arith.constant dense<0.000000e+00> : vector<16x120xf32>
    %16 = tpu.matmul %13, %15, %cst_11 {dimension_numbers = #tpu.dot_dimension_numbers<[1], [0], [0], [1], [0, 0, 1, 1], [], []>} : vector<16x32xf32>, vector<32x120xf32>, vector<16x120xf32> -> vector<16x120xf32>
    %c0_12 = arith.constant 0 : index
    %c0_13 = arith.constant 0 : index
    %c0_14 = arith.constant 0 : index
    %17 = vector.load %arg8[%c0_12, %c0_13, %c0_14] : memref<3x1x120xf32, #tpu.memory_space<vmem>>, vector<1x1x120xf32>
    %18 = vector.shape_cast %17 : vector<1x1x120xf32> to vector<1x120xf32>
    %19 = vector.broadcast %18 : vector<1x120xf32> to vector<16x120xf32>
    %20 = arith.addf %16, %19 : vector<16x120xf32>
    %21 = vector.extract_strided_slice %20 {offsets = [0, 0], sizes = [16, 60], strides = [1, 1]} : vector<16x120xf32> to vector<16x60xf32>
    %22 = vector.extract_strided_slice %6 {offsets = [0, 10], sizes = [16, 1], strides = [1, 1]} : vector<16x12xf32> to vector<16x1xf32>
    %23 = vector.shape_cast %22 : vector<16x1xf32> to vector<16x1xf32>
    %24 = vector.broadcast %23 : vector<16x1xf32> to vector<16x60xf32>
    %25 = vector.extract_strided_slice %6 {offsets = [0, 11], sizes = [16, 1], strides = [1, 1]} : vector<16x12xf32> to vector<16x1xf32>
    %26 = vector.shape_cast %25 : vector<16x1xf32> to vector<16x1xf32>
    %27 = vector.broadcast %26 : vector<16x1xf32> to vector<16x60xf32>
    %28 = vector.extract_strided_slice %20 {offsets = [0, 60], sizes = [16, 60], strides = [1, 1]} : vector<16x120xf32> to vector<16x60xf32>
    %29 = arith.select %4, %24, %27 : vector<16x60xi1>, vector<16x60xf32>
    %30 = arith.addf %28, %29 : vector<16x60xf32>
    %c0_15 = arith.constant 0 : index
    %c0_16 = arith.constant 0 : index
    %31 = vector.load %arg11[%c0_15, %c0_16] : memref<16x60xf32, #tpu.memory_space<vmem>>, vector<16x60xf32>
    tpu.vector_store %arg11[%c0_15, %c0_16], %21 {strides = array<i32>} : memref<16x60xf32, #tpu.memory_space<vmem>>, vector<16x60xf32>,
    %c0_17 = arith.constant 0 : index
    %c0_18 = arith.constant 0 : index
    %32 = vector.load %arg15[%c0_17, %c0_18] : memref<16x60xf32, #tpu.memory_space<vmem>>, vector<16x60xf32>
    tpu.vector_store %arg15[%c0_17, %c0_18], %30 {strides = array<i32>} : memref<16x60xf32, #tpu.memory_space<vmem>>, vector<16x60xf32>,
    %c1 = arith.constant 1 : index
    %c0_19 = arith.constant 0 : index
    %c0_20 = arith.constant 0 : index
    %33 = vector.load %arg1[%c1, %c0_19, %c0_20] : memref<3x16x12xf32, #tpu.memory_space<vmem>>, vector<1x16x12xf32>
    %34 = vector.shape_cast %33 : vector<1x16x12xf32> to vector<16x12xf32>
    %c1_21 = arith.constant 1 : index
    %c0_22 = arith.constant 0 : index
    %c0_23 = arith.constant 0 : index
    %35 = vector.load %arg5[%c1_21, %c0_22, %c0_23] : memref<3x12x32xf32, #tpu.memory_space<vmem>>, vector<1x12x32xf32>
    %36 = vector.shape_cast %35 : vector<1x12x32xf32> to vector<12x32xf32>
    %cst_24 = arith.constant dense<0.000000e+00> : vector<16x32xf32>
    %37 = tpu.matmul %34, %36, %cst_24 {dimension_numbers = #tpu.dot_dimension_numbers<[1], [0], [0], [1], [0, 0, 1, 1], [], []>} : vector<16x12xf32>, vector<12x32xf32>, vector<16x32xf32> -> vector<16x32xf32>
    %c1_25 = arith.constant 1 : index
    %c0_26 = arith.constant 0 : index
    %c0_27 = arith.constant 0 : index
    %38 = vector.load %arg6[%c1_25, %c0_26, %c0_27] : memref<3x1x32xf32, #tpu.memory_space<vmem>>, vector<1x1x32xf32>
    %39 = vector.shape_cast %38 : vector<1x1x32xf32> to vector<1x32xf32>
    %40 = vector.broadcast %39 : vector<1x32xf32> to vector<16x32xf32>
    %41 = arith.addf %37, %40 : vector<16x32xf32>
    %c1_28 = arith.constant 1 : index
    %c0_29 = arith.constant 0 : index
    %c0_30 = arith.constant 0 : index
    %42 = vector.load %arg7[%c1_28, %c0_29, %c0_30] : memref<3x32x120xf32, #tpu.memory_space<vmem>>, vector<1x32x120xf32>
    %43 = vector.shape_cast %42 : vector<1x32x120xf32> to vector<32x120xf32>
    %cst_31 = arith.constant dense<0.000000e+00> : vector<16x120xf32>
    %44 = tpu.matmul %41, %43, %cst_31 {dimension_numbers = #tpu.dot_dimension_numbers<[1], [0], [0], [1], [0, 0, 1, 1], [], []>} : vector<16x32xf32>, vector<32x120xf32>, vector<16x120xf32> -> vector<16x120xf32>
    %c1_32 = arith.constant 1 : index
    %c0_33 = arith.constant 0 : index
    %c0_34 = arith.constant 0 : index
    %45 = vector.load %arg8[%c1_32, %c0_33, %c0_34] : memref<3x1x120xf32, #tpu.memory_space<vmem>>, vector<1x1x120xf32>
    %46 = vector.shape_cast %45 : vector<1x1x120xf32> to vector<1x120xf32>
    %47 = vector.broadcast %46 : vector<1x120xf32> to vector<16x120xf32>
    %48 = arith.addf %44, %47 : vector<16x120xf32>
    %49 = vector.extract_strided_slice %48 {offsets = [0, 0], sizes = [16, 60], strides = [1, 1]} : vector<16x120xf32> to vector<16x60xf32>
    %50 = vector.extract_strided_slice %34 {offsets = [0, 10], sizes = [16, 1], strides = [1, 1]} : vector<16x12xf32> to vector<16x1xf32>
    %51 = vector.shape_cast %50 : vector<16x1xf32> to vector<16x1xf32>
    %52 = vector.broadcast %51 : vector<16x1xf32> to vector<16x60xf32>
    %53 = vector.extract_strided_slice %34 {offsets = [0, 11], sizes = [16, 1], strides = [1, 1]} : vector<16x12xf32> to vector<16x1xf32>
    %54 = vector.shape_cast %53 : vector<16x1xf32> to vector<16x1xf32>
    %55 = vector.broadcast %54 : vector<16x1xf32> to vector<16x60xf32>
    %56 = vector.extract_strided_slice %48 {offsets = [0, 60], sizes = [16, 60], strides = [1, 1]} : vector<16x120xf32> to vector<16x60xf32>
    %57 = arith.select %4, %52, %55 : vector<16x60xi1>, vector<16x60xf32>
    %58 = arith.addf %56, %57 : vector<16x60xf32>
    %c0_35 = arith.constant 0 : index
    %c0_36 = arith.constant 0 : index
    %59 = vector.load %arg12[%c0_35, %c0_36] : memref<16x60xf32, #tpu.memory_space<vmem>>, vector<16x60xf32>
    tpu.vector_store %arg12[%c0_35, %c0_36], %49 {strides = array<i32>} : memref<16x60xf32, #tpu.memory_space<vmem>>, vector<16x60xf32>,
    %c0_37 = arith.constant 0 : index
    %c0_38 = arith.constant 0 : index
    %60 = vector.load %arg16[%c0_37, %c0_38] : memref<16x60xf32, #tpu.memory_space<vmem>>, vector<16x60xf32>
    tpu.vector_store %arg16[%c0_37, %c0_38], %58 {strides = array<i32>} : memref<16x60xf32, #tpu.memory_space<vmem>>, vector<16x60xf32>,
    %c2 = arith.constant 2 : index
    %c0_39 = arith.constant 0 : index
    %c0_40 = arith.constant 0 : index
    %61 = vector.load %arg1[%c2, %c0_39, %c0_40] : memref<3x16x12xf32, #tpu.memory_space<vmem>>, vector<1x16x12xf32>
    %62 = vector.shape_cast %61 : vector<1x16x12xf32> to vector<16x12xf32>
    %c2_41 = arith.constant 2 : index
    %c0_42 = arith.constant 0 : index
    %c0_43 = arith.constant 0 : index
    %63 = vector.load %arg5[%c2_41, %c0_42, %c0_43] : memref<3x12x32xf32, #tpu.memory_space<vmem>>, vector<1x12x32xf32>
    %64 = vector.shape_cast %63 : vector<1x12x32xf32> to vector<12x32xf32>
    %cst_44 = arith.constant dense<0.000000e+00> : vector<16x32xf32>
    %65 = tpu.matmul %62, %64, %cst_44 {dimension_numbers = #tpu.dot_dimension_numbers<[1], [0], [0], [1], [0, 0, 1, 1], [], []>} : vector<16x12xf32>, vector<12x32xf32>, vector<16x32xf32> -> vector<16x32xf32>
    %c2_45 = arith.constant 2 : index
    %c0_46 = arith.constant 0 : index
    %c0_47 = arith.constant 0 : index
    %66 = vector.load %arg6[%c2_45, %c0_46, %c0_47] : memref<3x1x32xf32, #tpu.memory_space<vmem>>, vector<1x1x32xf32>
    %67 = vector.shape_cast %66 : vector<1x1x32xf32> to vector<1x32xf32>
    %68 = vector.broadcast %67 : vector<1x32xf32> to vector<16x32xf32>
    %69 = arith.addf %65, %68 : vector<16x32xf32>
    %c2_48 = arith.constant 2 : index
    %c0_49 = arith.constant 0 : index
    %c0_50 = arith.constant 0 : index
    %70 = vector.load %arg7[%c2_48, %c0_49, %c0_50] : memref<3x32x120xf32, #tpu.memory_space<vmem>>, vector<1x32x120xf32>
    %71 = vector.shape_cast %70 : vector<1x32x120xf32> to vector<32x120xf32>
    %cst_51 = arith.constant dense<0.000000e+00> : vector<16x120xf32>
    %72 = tpu.matmul %69, %71, %cst_51 {dimension_numbers = #tpu.dot_dimension_numbers<[1], [0], [0], [1], [0, 0, 1, 1], [], []>} : vector<16x32xf32>, vector<32x120xf32>, vector<16x120xf32> -> vector<16x120xf32>
    %c2_52 = arith.constant 2 : index
    %c0_53 = arith.constant 0 : index
    %c0_54 = arith.constant 0 : index
    %73 = vector.load %arg8[%c2_52, %c0_53, %c0_54] : memref<3x1x120xf32, #tpu.memory_space<vmem>>, vector<1x1x120xf32>
    %74 = vector.shape_cast %73 : vector<1x1x120xf32> to vector<1x120xf32>
    %75 = vector.broadcast %74 : vector<1x120xf32> to vector<16x120xf32>
    %76 = arith.addf %72, %75 : vector<16x120xf32>
    %77 = vector.extract_strided_slice %76 {offsets = [0, 0], sizes = [16, 60], strides = [1, 1]} : vector<16x120xf32> to vector<16x60xf32>
    %78 = vector.extract_strided_slice %62 {offsets = [0, 10], sizes = [16, 1], strides = [1, 1]} : vector<16x12xf32> to vector<16x1xf32>
    %79 = vector.shape_cast %78 : vector<16x1xf32> to vector<16x1xf32>
    %80 = vector.broadcast %79 : vector<16x1xf32> to vector<16x60xf32>
    %81 = vector.extract_strided_slice %62 {offsets = [0, 11], sizes = [16, 1], strides = [1, 1]} : vector<16x12xf32> to vector<16x1xf32>
    %82 = vector.shape_cast %81 : vector<16x1xf32> to vector<16x1xf32>
    %83 = vector.broadcast %82 : vector<16x1xf32> to vector<16x60xf32>
    %84 = vector.extract_strided_slice %76 {offsets = [0, 60], sizes = [16, 60], strides = [1, 1]} : vector<16x120xf32> to vector<16x60xf32>
    %85 = arith.select %4, %80, %83 : vector<16x60xi1>, vector<16x60xf32>
    %86 = arith.addf %84, %85 : vector<16x60xf32>
    %c0_55 = arith.constant 0 : index
    %c0_56 = arith.constant 0 : index
    %87 = vector.load %arg13[%c0_55, %c0_56] : memref<16x60xf32, #tpu.memory_space<vmem>>, vector<16x60xf32>
    tpu.vector_store %arg13[%c0_55, %c0_56], %77 {strides = array<i32>} : memref<16x60xf32, #tpu.memory_space<vmem>>, vector<16x60xf32>,
    %c0_57 = arith.constant 0 : index
    %c0_58 = arith.constant 0 : index
    %88 = vector.load %arg17[%c0_57, %c0_58] : memref<16x60xf32, #tpu.memory_space<vmem>>, vector<16x60xf32>
    tpu.vector_store %arg17[%c0_57, %c0_58], %86 {strides = array<i32>} : memref<16x60xf32, #tpu.memory_space<vmem>>, vector<16x60xf32>,
    %89 = vector.extract_strided_slice %30 {offsets = [0, 0], sizes = [8, 60], strides = [1, 1]} : vector<16x60xf32> to vector<8x60xf32>
    %90 = vector.extract_strided_slice %58 {offsets = [0, 0], sizes = [8, 60], strides = [1, 1]} : vector<16x60xf32> to vector<8x60xf32>
    %91 = vector.extract_strided_slice %86 {offsets = [0, 0], sizes = [8, 60], strides = [1, 1]} : vector<16x60xf32> to vector<8x60xf32>
    %92 = vector.extract_strided_slice %30 {offsets = [8, 0], sizes = [8, 60], strides = [1, 1]} : vector<16x60xf32> to vector<8x60xf32>
    %93 = vector.extract_strided_slice %58 {offsets = [8, 0], sizes = [8, 60], strides = [1, 1]} : vector<16x60xf32> to vector<8x60xf32>
    %94 = vector.extract_strided_slice %86 {offsets = [8, 0], sizes = [8, 60], strides = [1, 1]} : vector<16x60xf32> to vector<8x60xf32>
    %95 = tpu.concatenate %89, %90, %91, %92, %93, %94 in 0 : vector<8x60xf32>, vector<8x60xf32>, vector<8x60xf32>, vector<8x60xf32>, vector<8x60xf32>, vector<8x60xf32> -> vector<48x60xf32>
    %c0_59 = arith.constant 0 : index
    %c0_60 = arith.constant 0 : index
    %96 = vector.load %arg4[%c0_59, %c0_60] : memref<48x6xf32, #tpu.memory_space<vmem>>, vector<48x6xf32>
    %97 = tpu.iota {dimensions = array<i32: 1>} : vector<48x60xi32>
    %c1_i32_61 = arith.constant 1 : i32
    %98 = vector.broadcast %c1_i32_61 : i32 to vector<48x60xi32>
    %99 = arith.andi %97, %98 : vector<48x60xi32>
    %c0_i32_62 = arith.constant 0 : i32
    %100 = vector.broadcast %c0_i32_62 : i32 to vector<48x60xi32>
    %101 = arith.cmpi eq, %99, %100 : vector<48x60xi32>
    %102 = vector.extract_strided_slice %96 {offsets = [0, 0], sizes = [48, 1], strides = [1, 1]} : vector<48x6xf32> to vector<48x1xf32>
    %103 = vector.shape_cast %102 : vector<48x1xf32> to vector<48x1xf32>
    %104 = vector.broadcast %103 : vector<48x1xf32> to vector<48x60xf32>
    %105 = vector.extract_strided_slice %96 {offsets = [0, 3], sizes = [48, 1], strides = [1, 1]} : vector<48x6xf32> to vector<48x1xf32>
    %106 = vector.shape_cast %105 : vector<48x1xf32> to vector<48x1xf32>
    %107 = vector.broadcast %106 : vector<48x1xf32> to vector<48x60xf32>
    %108 = arith.select %101, %104, %107 : vector<48x60xi1>, vector<48x60xf32>
    %109 = vector.extract_strided_slice %96 {offsets = [0, 1], sizes = [48, 1], strides = [1, 1]} : vector<48x6xf32> to vector<48x1xf32>
    %110 = vector.shape_cast %109 : vector<48x1xf32> to vector<48x1xf32>
    %111 = vector.broadcast %110 : vector<48x1xf32> to vector<48x60xf32>
    %112 = vector.extract_strided_slice %96 {offsets = [0, 2], sizes = [48, 1], strides = [1, 1]} : vector<48x6xf32> to vector<48x1xf32>
    %113 = vector.shape_cast %112 : vector<48x1xf32> to vector<48x1xf32>
    %114 = vector.broadcast %113 : vector<48x1xf32> to vector<48x60xf32>
    %115 = arith.select %101, %111, %114 : vector<48x60xi1>, vector<48x60xf32>
    %116 = vector.extract_strided_slice %96 {offsets = [0, 4], sizes = [48, 1], strides = [1, 1]} : vector<48x6xf32> to vector<48x1xf32>
    %117 = vector.shape_cast %116 : vector<48x1xf32> to vector<48x1xf32>
    %118 = vector.broadcast %117 : vector<48x1xf32> to vector<48x60xf32>
    %119 = vector.extract_strided_slice %96 {offsets = [0, 5], sizes = [48, 1], strides = [1, 1]} : vector<48x6xf32> to vector<48x1xf32>
    %120 = vector.shape_cast %119 : vector<48x1xf32> to vector<48x1xf32>
    %121 = vector.broadcast %120 : vector<48x1xf32> to vector<48x60xf32>
    %122 = arith.select %101, %118, %121 : vector<48x60xi1>, vector<48x60xf32>
    %c0_63 = arith.constant 0 : index
    %c0_64 = arith.constant 0 : index
    %123 = vector.load %arg9[%c0_63, %c0_64] : memref<60x60xf32, #tpu.memory_space<vmem>>, vector<60x60xf32>
    %cst_65 = arith.constant dense<0.000000e+00> : vector<48x60xf32>
    %124 = tpu.matmul %95, %123, %cst_65 {dimension_numbers = #tpu.dot_dimension_numbers<[1], [0], [0], [1], [0, 0, 1, 1], [], []>} : vector<48x60xf32>, vector<60x60xf32>, vector<48x60xf32> -> vector<48x60xf32>
    %125 = arith.mulf %108, %95 : vector<48x60xf32>
    %126 = arith.mulf %115, %124 : vector<48x60xf32>
    %127 = arith.addf %125, %126 : vector<48x60xf32>
    %128 = arith.addf %127, %122 : vector<48x60xf32>
    %129 = vector.extract_strided_slice %128 {offsets = [0, 0], sizes = [24, 60], strides = [1, 1]} : vector<48x60xf32> to vector<24x60xf32>
    %c0_66 = arith.constant 0 : index
    %c0_67 = arith.constant 0 : index
    %c0_68 = arith.constant 0 : index
    %130 = vector.load %arg3[%c0_66, %c0_67, %c0_68] : memref<2x8x24xf32, #tpu.memory_space<vmem>>, vector<1x8x24xf32>
    %131 = vector.shape_cast %130 : vector<1x8x24xf32> to vector<8x24xf32>
    %cst_69 = arith.constant dense<0.000000e+00> : vector<8x60xf32>
    %132 = tpu.matmul %131, %129, %cst_69 {dimension_numbers = #tpu.dot_dimension_numbers<[1], [0], [0], [1], [0, 0, 1, 1], [], []>} : vector<8x24xf32>, vector<24x60xf32>, vector<8x60xf32> -> vector<8x60xf32>
    %c0_70 = arith.constant 0 : index
    %c0_71 = arith.constant 0 : index
    %c0_72 = arith.constant 0 : index
    %133 = vector.load %arg2[%c0_70, %c0_71, %c0_72] : memref<2x8x12xf32, #tpu.memory_space<vmem>>, vector<1x8x12xf32>
    %134 = vector.shape_cast %133 : vector<1x8x12xf32> to vector<8x12xf32>
    %135 = vector.extract_strided_slice %134 {offsets = [0, 10], sizes = [8, 2], strides = [1, 1]} : vector<8x12xf32> to vector<8x2xf32>
    %136 = vector.extract_strided_slice %132 {offsets = [0, 0], sizes = [8, 58], strides = [1, 1]} : vector<8x60xf32> to vector<8x58xf32>
    %137 = tpu.concatenate %135, %136 in 1 : vector<8x2xf32>, vector<8x58xf32> -> vector<8x60xf32>
    %138 = arith.subf %132, %137 : vector<8x60xf32>
    %c0_73 = arith.constant 0 : index
    %c0_74 = arith.constant 0 : index
    %c0_75 = arith.constant 0 : index
    %139 = vector.load %arg14[%c0_73, %c0_74, %c0_75] : memref<2x8x60xf32, #tpu.memory_space<vmem>>, vector<1x8x60xf32>
    %140 = vector.shape_cast %139 : vector<1x8x60xf32> to vector<8x60xf32>
    %141 = vector.shape_cast %132 : vector<8x60xf32> to vector<1x8x60xf32>
    tpu.vector_store %arg14[%c0_73, %c0_74, %c0_75], %141 {strides = array<i32>} : memref<2x8x60xf32, #tpu.memory_space<vmem>>, vector<1x8x60xf32>,
    %c0_76 = arith.constant 0 : index
    %c0_77 = arith.constant 0 : index
    %c0_78 = arith.constant 0 : index
    %142 = vector.load %arg10[%c0_76, %c0_77, %c0_78] : memref<2x8x60xf32, #tpu.memory_space<vmem>>, vector<1x8x60xf32>
    %143 = vector.shape_cast %142 : vector<1x8x60xf32> to vector<8x60xf32>
    %144 = vector.shape_cast %138 : vector<8x60xf32> to vector<1x8x60xf32>
    tpu.vector_store %arg10[%c0_76, %c0_77, %c0_78], %144 {strides = array<i32>} : memref<2x8x60xf32, #tpu.memory_space<vmem>>, vector<1x8x60xf32>,
    %145 = vector.extract_strided_slice %128 {offsets = [24, 0], sizes = [24, 60], strides = [1, 1]} : vector<48x60xf32> to vector<24x60xf32>
    %c1_79 = arith.constant 1 : index
    %c0_80 = arith.constant 0 : index
    %c0_81 = arith.constant 0 : index
    %146 = vector.load %arg3[%c1_79, %c0_80, %c0_81] : memref<2x8x24xf32, #tpu.memory_space<vmem>>, vector<1x8x24xf32>
    %147 = vector.shape_cast %146 : vector<1x8x24xf32> to vector<8x24xf32>
    %cst_82 = arith.constant dense<0.000000e+00> : vector<8x60xf32>
    %148 = tpu.matmul %147, %145, %cst_82 {dimension_numbers = #tpu.dot_dimension_numbers<[1], [0], [0], [1], [0, 0, 1, 1], [], []>} : vector<8x24xf32>, vector<24x60xf32>, vector<8x60xf32> -> vector<8x60xf32>
    %c1_83 = arith.constant 1 : index
    %c0_84 = arith.constant 0 : index
    %c0_85 = arith.constant 0 : index
    %149 = vector.load %arg2[%c1_83, %c0_84, %c0_85] : memref<2x8x12xf32, #tpu.memory_space<vmem>>, vector<1x8x12xf32>
    %150 = vector.shape_cast %149 : vector<1x8x12xf32> to vector<8x12xf32>
    %151 = vector.extract_strided_slice %150 {offsets = [0, 10], sizes = [8, 2], strides = [1, 1]} : vector<8x12xf32> to vector<8x2xf32>
    %152 = vector.extract_strided_slice %148 {offsets = [0, 0], sizes = [8, 58], strides = [1, 1]} : vector<8x60xf32> to vector<8x58xf32>
    %153 = tpu.concatenate %151, %152 in 1 : vector<8x2xf32>, vector<8x58xf32> -> vector<8x60xf32>
    %154 = arith.subf %148, %153 : vector<8x60xf32>
    %c1_86 = arith.constant 1 : index
    %c0_87 = arith.constant 0 : index
    %c0_88 = arith.constant 0 : index
    %155 = vector.load %arg14[%c1_86, %c0_87, %c0_88] : memref<2x8x60xf32, #tpu.memory_space<vmem>>, vector<1x8x60xf32>
    %156 = vector.shape_cast %155 : vector<1x8x60xf32> to vector<8x60xf32>
    %157 = vector.shape_cast %148 : vector<8x60xf32> to vector<1x8x60xf32>
    tpu.vector_store %arg14[%c1_86, %c0_87, %c0_88], %157 {strides = array<i32>} : memref<2x8x60xf32, #tpu.memory_space<vmem>>, vector<1x8x60xf32>,
    %c1_89 = arith.constant 1 : index
    %c0_90 = arith.constant 0 : index
    %c0_91 = arith.constant 0 : index
    %158 = vector.load %arg10[%c1_89, %c0_90, %c0_91] : memref<2x8x60xf32, #tpu.memory_space<vmem>>, vector<1x8x60xf32>
    %159 = vector.shape_cast %158 : vector<1x8x60xf32> to vector<8x60xf32>
    %160 = vector.shape_cast %154 : vector<8x60xf32> to vector<1x8x60xf32>
    tpu.vector_store %arg10[%c1_89, %c0_90, %c0_91], %160 {strides = array<i32>} : memref<2x8x60xf32, #tpu.memory_space<vmem>>, vector<1x8x60xf32>,
    return
  }
  func.func @transform_0(%arg0: i32) -> (i32, i32, i32) {
    %c0_i32 = arith.constant 0 : i32
    %c0_i32_0 = arith.constant 0 : i32
    %c0_i32_1 = arith.constant 0 : i32
    %c0_i32_2 = arith.constant 0 : i32
    return %c0_i32, %c0_i32_0, %c0_i32_1 : i32, i32, i32
  }
  func.func @transform_1(%arg0: i32) -> (i32, i32, i32) {
    %c0_i32 = arith.constant 0 : i32
    %c0_i32_0 = arith.constant 0 : i32
    %c0_i32_1 = arith.constant 0 : i32
    %c0_i32_2 = arith.constant 0 : i32
    return %c0_i32, %c0_i32_0, %c0_i32_1 : i32, i32, i32
  }
  func.func @transform_2(%arg0: i32) -> (i32, i32, i32) {
    %c0_i32 = arith.constant 0 : i32
    %c0_i32_0 = arith.constant 0 : i32
    %c0_i32_1 = arith.constant 0 : i32
    %c0_i32_2 = arith.constant 0 : i32
    return %c0_i32, %c0_i32_0, %c0_i32_1 : i32, i32, i32
  }
  func.func @transform_3(%arg0: i32) -> (i32, i32) {
    %c0_i32 = arith.constant 0 : i32
    %c0_i32_0 = arith.constant 0 : i32
    %c0_i32_1 = arith.constant 0 : i32
    return %c0_i32, %c0_i32_0 : i32, i32
  }
  func.func @transform_4(%arg0: i32) -> (i32, i32, i32) {
    %c0_i32 = arith.constant 0 : i32
    %c0_i32_0 = arith.constant 0 : i32
    %c0_i32_1 = arith.constant 0 : i32
    %c0_i32_2 = arith.constant 0 : i32
    return %c0_i32, %c0_i32_0, %c0_i32_1 : i32, i32, i32
  }
  func.func @transform_5(%arg0: i32) -> (i32, i32, i32) {
    %c0_i32 = arith.constant 0 : i32
    %c0_i32_0 = arith.constant 0 : i32
    %c0_i32_1 = arith.constant 0 : i32
    %c0_i32_2 = arith.constant 0 : i32
    return %c0_i32, %c0_i32_0, %c0_i32_1 : i32, i32, i32
  }
  func.func @transform_6(%arg0: i32) -> (i32, i32, i32) {
    %c0_i32 = arith.constant 0 : i32
    %c0_i32_0 = arith.constant 0 : i32
    %c0_i32_1 = arith.constant 0 : i32
    %c0_i32_2 = arith.constant 0 : i32
    return %c0_i32, %c0_i32_0, %c0_i32_1 : i32, i32, i32
  }
  func.func @transform_7(%arg0: i32) -> (i32, i32, i32) {
    %c0_i32 = arith.constant 0 : i32
    %c0_i32_0 = arith.constant 0 : i32
    %c0_i32_1 = arith.constant 0 : i32
    %c0_i32_2 = arith.constant 0 : i32
    return %c0_i32, %c0_i32_0, %c0_i32_1 : i32, i32, i32
  }
  func.func @transform_8(%arg0: i32) -> (i32, i32) {
    %c0_i32 = arith.constant 0 : i32
    %c0_i32_0 = arith.constant 0 : i32
    %c0_i32_1 = arith.constant 0 : i32
    return %c0_i32, %c0_i32_0 : i32, i32
  }
  func.func @transform_9(%arg0: i32) -> (i32, i32, i32) {
    %c0_i32 = arith.constant 0 : i32
    %c0_i32_0 = arith.constant 0 : i32
    %c0_i32_1 = arith.constant 0 : i32
    %c0_i32_2 = arith.constant 0 : i32
    return %c0_i32, %c0_i32_0, %c0_i32_1 : i32, i32, i32
  }
  func.func @transform_10(%arg0: i32) -> (i32, i32) {
    %c0_i32 = arith.constant 0 : i32
    %c0_i32_0 = arith.constant 0 : i32
    %c0_i32_1 = arith.constant 0 : i32
    return %c0_i32, %c0_i32_0 : i32, i32
  }
  func.func @transform_11(%arg0: i32) -> (i32, i32) {
    %c0_i32 = arith.constant 0 : i32
    %c0_i32_0 = arith.constant 0 : i32
    %c0_i32_1 = arith.constant 0 : i32
    return %c0_i32, %c0_i32_0 : i32, i32
  }
  func.func @transform_12(%arg0: i32) -> (i32, i32) {
    %c0_i32 = arith.constant 0 : i32
    %c0_i32_0 = arith.constant 0 : i32
    %c0_i32_1 = arith.constant 0 : i32
    return %c0_i32, %c0_i32_0 : i32, i32
  }
  func.func @transform_13(%arg0: i32) -> (i32, i32, i32) {
    %c0_i32 = arith.constant 0 : i32
    %c0_i32_0 = arith.constant 0 : i32
    %c0_i32_1 = arith.constant 0 : i32
    %c0_i32_2 = arith.constant 0 : i32
    return %c0_i32, %c0_i32_0, %c0_i32_1 : i32, i32, i32
  }
  func.func @transform_14(%arg0: i32) -> (i32, i32) {
    %c0_i32 = arith.constant 0 : i32
    %c0_i32_0 = arith.constant 0 : i32
    %c0_i32_1 = arith.constant 0 : i32
    return %c0_i32, %c0_i32_0 : i32, i32
  }
  func.func @transform_15(%arg0: i32) -> (i32, i32) {
    %c0_i32 = arith.constant 0 : i32
    %c0_i32_0 = arith.constant 0 : i32
    %c0_i32_1 = arith.constant 0 : i32
    return %c0_i32, %c0_i32_0 : i32, i32
  }
  func.func @transform_16(%arg0: i32) -> (i32, i32) {
    %c0_i32 = arith.constant 0 : i32
    %c0_i32_0 = arith.constant 0 : i32
    %c0_i32_1 = arith.constant 0 : i32
    return %c0_i32, %c0_i32_0 : i32, i32
  }
}

</mosaic_0001>

<llo_original>
// kernel: nmp_encoder_forward.1
$region0: #{nmp_encoder_forward.1}
  #allocation0 [shape = 'u32[]', space=smem, size = 0x4, offset = 0x4, fixed_abs, tag = 'smem constant byte address 0x4 - core index']
  #allocation1 [shape = 'u32[72,128]{1,0:T(1,128)}', space=vmem, size = 0x9000, scoped, tag = 'internal scratch']
  %s0 = inlined_call_operand.vmem [shape: f32[3,16,12], index: 0, kind: input, shape index: {}]
  %s1 = inlined_call_operand.vmem [shape: f32[2,8,12], index: 1, kind: input, shape index: {}]
  %s2 = inlined_call_operand.vmem [shape: f32[2,8,24], index: 2, kind: input, shape index: {}]
  %s3 = inlined_call_operand.vmem [shape: f32[48,6], index: 3, kind: input, shape index: {}]
  %s4 = inlined_call_operand.vmem [shape: f32[3,12,32], index: 4, kind: input, shape index: {}]
  %s5 = inlined_call_operand.vmem [shape: f32[3,1,32], index: 5, kind: input, shape index: {}]
  %s6 = inlined_call_operand.vmem [shape: f32[3,32,120], index: 6, kind: input, shape index: {}]
  %s7 = inlined_call_operand.vmem [shape: f32[3,1,120], index: 7, kind: input, shape index: {}]
  %s8 = inlined_call_operand.vmem [shape: f32[60,60], index: 8, kind: input, shape index: {}]
  %s9 = inlined_call_operand.hbm [shape: f32[2,8,60], index: 9, kind: output, shape index: {0}]
  %s10 = inlined_call_operand.hbm [shape: f32[16,60], index: 10, kind: output, shape index: {1}]
  %s11 = inlined_call_operand.hbm [shape: f32[16,60], index: 11, kind: output, shape index: {2}]
  %s12 = inlined_call_operand.hbm [shape: f32[16,60], index: 12, kind: output, shape index: {3}]
  %s13 = inlined_call_operand.hbm [shape: f32[2,8,60], index: 13, kind: output, shape index: {4}]
  %s14 = inlined_call_operand.hbm [shape: f32[16,60], index: 14, kind: output, shape index: {5}]
  %s15 = inlined_call_operand.hbm [shape: f32[16,60], index: 15, kind: output, shape index: {6}]
  %s16 = inlined_call_operand.hbm [shape: f32[16,60], index: 16, kind: output, shape index: {7}]
  %17 = xla_tuple %s9, %s10, %s11, %s12, %s13, %s14, %s15, %s16
  %s18 = sld [smem:[#allocation0]]
  $region102: #{nmp_encoder_forward.1} parent=0
    _
  %s20 = ssub.s32 1, %s18
  %s21 = scalar_select 0, %s20, %s18
  $region1: #{nmp_encoder_forward.1} parent=0
    #allocation2 [shape = 'u8[8192]{0}', space=vmem, size = 0x2000, scoped, tag = 'output window, operand 0, single buffered']
    #allocation3 [shape = 's32[1]{0}', space=sflag, size = 0x4, scoped, tag = 'scoped memory for nmp_encoder_forward.1']
    #allocation4 [shape = 'u8[8192]{0}', space=vmem, size = 0x2000, scoped, tag = 'output window, operand 1, single buffered']
    #allocation5 [shape = 's32[1]{0}', space=sflag, size = 0x4, scoped, tag = 'scoped memory for nmp_encoder_forward.1']
    #allocation6 [shape = 'u8[8192]{0}', space=vmem, size = 0x2000, scoped, tag = 'output window, operand 2, single buffered']
    #allocation7 [shape = 'u8[8192]{0}', space=vmem, size = 0x2000, scoped, tag = 'output window, operand 3, single buffered']
    #allocation8 [shape = 's32[1]{0}', space=sflag, size = 0x4, scoped, tag = 'scoped memory for nmp_encoder_forward.1']
    #allocation9 [shape = 'u8[8192]{0}', space=vmem, size = 0x2000, scoped, tag = 'output window, operand 4, single buffered']
    #allocation10 [shape = 'u8[8192]{0}', space=vmem, size = 0x2000, scoped, tag = 'output window, operand 5, single buffered']
    #allocation11 [shape = 's32[1]{0}', space=sflag, size = 0x4, scoped, tag = 'scoped memory for nmp_encoder_forward.1']
    #allocation12 [shape = 'u8[8192]{0}', space=vmem, size = 0x2000, scoped, tag = 'output window, operand 6, single buffered']
    #allocation13 [shape = 'u8[8192]{0}', space=vmem, size = 0x2000, scoped, tag = 'output window, operand 7, single buffered']
    #allocation14 [shape = 's32[1]{0}', space=sflag, size = 0x4, scoped, tag = 'scoped memory for nmp_encoder_forward.1']
    %22 = vsyncpa [#allocation3], 0
    %23 = vsyncpa [#allocation5], 0
    %24 = vsyncpa [#allocation8], 0
    %25 = vsyncpa [#allocation11], 0
    %26 = vsyncpa [#allocation14], 0
    // Predicated region
    $region2: #{nmp_encoder_forward.1} parent=1 // pred_check
      _
    $region3: #{nmp_encoder_forward.1} parent=1 // pred_check_branch
      %28 = sbr.rel (0) target = $region5
    $region4: #{nmp_encoder_forward.1} parent=1 // pred_region
      _
    $region5: #{nmp_encoder_forward.1} parent=1 // pred_fallthru
      _
    // Predicated region
    $region6: #{nmp_encoder_forward.1} parent=1 // pred_check
      _
    $region7: #{nmp_encoder_forward.1} parent=1 // pred_check_branch
      %30 = sbr.rel (0) target = $region9
    $region8: #{nmp_encoder_forward.1} parent=1 // pred_region
      _
    $region9: #{nmp_encoder_forward.1} parent=1 // pred_fallthru
      _
    // Predicated region
    $region10: #{nmp_encoder_forward.1} parent=1 // pred_check
      _
    $region11: #{nmp_encoder_forward.1} parent=1 // pred_check_branch
      %32 = sbr.rel (0) target = $region13
    $region12: #{nmp_encoder_forward.1} parent=1 // pred_region
      _
    $region13: #{nmp_encoder_forward.1} parent=1 // pred_fallthru
      _
    // Predicated region
    $region14: #{nmp_encoder_forward.1} parent=1 // pred_check
      _
    $region15: #{nmp_encoder_forward.1} parent=1 // pred_check_branch
      %34 = sbr.rel (0) target = $region17
    $region16: #{nmp_encoder_forward.1} parent=1 // pred_region
      _
    $region17: #{nmp_encoder_forward.1} parent=1 // pred_fallthru
      _
    // Predicated region
    $region18: #{nmp_encoder_forward.1} parent=1 // pred_check
      _
    $region19: #{nmp_encoder_forward.1} parent=1 // pred_check_branch
      %36 = sbr.rel (0) target = $region21
    $region20: #{nmp_encoder_forward.1} parent=1 // pred_region
      _
    $region21: #{nmp_encoder_forward.1} parent=1 // pred_fallthru
      _
    // Predicated region
    $region22: #{nmp_encoder_forward.1} parent=1 // pred_check
      _
    $region23: #{nmp_encoder_forward.1} parent=1 // pred_check_branch
      %38 = sbr.rel (0) target = $region25
    $region24: #{nmp_encoder_forward.1} parent=1 // pred_region
      _
    $region25: #{nmp_encoder_forward.1} parent=1 // pred_fallthru
      _
    // Predicated region
    $region26: #{nmp_encoder_forward.1} parent=1 // pred_check
      _
    $region27: #{nmp_encoder_forward.1} parent=1 // pred_check_branch
      %40 = sbr.rel (0) target = $region29
    $region28: #{nmp_encoder_forward.1} parent=1 // pred_region
      _
    $region29: #{nmp_encoder_forward.1} parent=1 // pred_fallthru
      _
    // Predicated region
    $region30: #{nmp_encoder_forward.1} parent=1 // pred_check
      _
    $region31: #{nmp_encoder_forward.1} parent=1 // pred_check_branch
      %42 = sbr.rel (0) target = $region33
    $region32: #{nmp_encoder_forward.1} parent=1 // pred_region
      _
    $region33: #{nmp_encoder_forward.1} parent=1 // pred_fallthru
      _
    // Predicated region
    $region34: #{nmp_encoder_forward.1} parent=1 // pred_check
      _
    $region35: #{nmp_encoder_forward.1} parent=1 // pred_check_branch
      %44 = sbr.rel (0) target = $region37
    $region36: #{nmp_encoder_forward.1} parent=1 // pred_region
      _
    $region37: #{nmp_encoder_forward.1} parent=1 // pred_fallthru
      _
    %v45 = vlaneseq
    %v46 = vand.u32 %v45, 127
    %v47 = vand.u32 %v46, 1
    %vm48 = vcmp.eq.s32.totalorder %v47, 0
    %v49 = vld [vmem:[%s0] sm:$0xff]
    %v50 = vld [vmem:[%s0 + $0x8] sm:$0xff]
    %v51 = vld [vmem:[%s4] sm:$0xff]
    %v52 = vld [vmem:[%s4 + $0x8] sm:$0xf]
    %v53 = vld [vmem:[%s5] sm:$0x1]
    %v55 = vperm.slane %v53, 0
    %vm57 = vcmask 97280
    %v59 = vsel %vm57, %v49, 0
    %v62 = vsel %vm57, %v50, 0
    %vm64 = vcmask 1043456
    %v66 = vsel %vm64, %v52, 0
    %68 = vmatpush.msra.mxu0 0.0
    %69 = vmatpush.msra.mxu0 0.0
    %70 = vmatpush.msra.mxu0 0.0
    %71 = vmatpush.msra.mxu0 0.0
    %72 = vmatpush.msra.mxu0 0.0
    %73 = vmatpush.msra.mxu0 0.0
    %74 = vmatpush.msra.mxu0 0.0
    %75 = vmatpush.msra.mxu0 0.0
    %76 = vmatpush.msra.mxu0 0.0
    %77 = vmatpush.msra.mxu0 0.0
    %78 = vmatpush.msra.mxu0 0.0
    %79 = vmatpush.msra.mxu0 0.0
    %80 = vmatpush.msra.mxu0 0.0
    %81 = vmatpush.msra.mxu0 0.0
    %82 = vmatpush.msra.mxu0 %v66
    %83 = vmatpush.msra.mxu0 %v51
    %84 = vmatmul.f32.gmra.mxu0 %v59
    %v85 = vpop.f32.mrf.mxu0
    %v86 = vadd.f32 %v55, %v85
    %87 = vmatmul.f32.gmra.mxu0 %v62
    %v88 = vpop.f32.mrf.mxu0
    %v89 = vadd.f32 %v55, %v88
    %90 = vdwg.mxu0
    %v91 = vld [vmem:[%s6] sm:$0xff]
    %v92 = vld [vmem:[%s6 + $0x8] sm:$0xff]
    %v93 = vld [vmem:[%s6 + $0x10] sm:$0xff]
    %v94 = vld [vmem:[%s6 + $0x18] sm:$0xff]
    %v95 = vld [vmem:[%s7] sm:$0x1]
    %v97 = vperm.slane %v95, 0
    %vm99 = vcmask 261120
    %v101 = vsel %vm99, %v86, 0
    %v104 = vsel %vm99, %v89, 0
    %106 = vmatpush.msra.mxu0 0.0
    %107 = vmatpush.msra.mxu0 0.0
    %108 = vmatpush.msra.mxu0 0.0
    %109 = vmatpush.msra.mxu0 0.0
    %110 = vmatpush.msra.mxu0 0.0
    %111 = vmatpush.msra.mxu0 0.0
    %112 = vmatpush.msra.mxu0 0.0
    %113 = vmatpush.msra.mxu0 0.0
    %114 = vmatpush.msra.mxu0 0.0
    %115 = vmatpush.msra.mxu0 0.0
    %116 = vmatpush.msra.mxu0 0.0
    %117 = vmatpush.msra.mxu0 0.0
    %118 = vmatpush.msra.mxu0 %v94
    %119 = vmatpush.msra.mxu0 %v93
    %120 = vmatpush.msra.mxu0 %v92
    %121 = vmatpush.msra.mxu0 %v91
    %122 = vmatmul.f32.gmra.mxu0 %v101
    %v123 = vpop.f32.mrf.mxu0
    %v124 = vadd.f32 %v97, %v123
    %125 = vmatmul.f32.gmra.mxu0 %v104
    %v126 = vpop.f32.mrf.mxu0
    %v127 = vadd.f32 %v97, %v126
    %128 = vdwg.mxu0
    %129 = vset.pattern.permute.xlu0 10
    %130 = vperm.xlu0 %129, %v49
    %v131 = vpop.permute.xlu0 %130
    %133 = vset.pattern.permute.xlu0 10
    %134 = vperm.xlu0 %133, %v50
    %v135 = vpop.permute.xlu0 %134
    %137 = vset.pattern.permute.xlu0 11
    %138 = vperm.xlu0 %137, %v49
    %v139 = vpop.permute.xlu0 %138
    %141 = vset.pattern.permute.xlu0 11
    %142 = vperm.xlu0 %141, %v50
    %v143 = vpop.permute.xlu0 %142
    %v145 = vsel %vm48, %v131, %v139
    %v146 = vsel %vm48, %v135, %v143
    %149 = vrot.lane.b32.xlu0 %v145, 60
    %v150 = vpop.permute.xlu0 %149
    %151 = vrot.lane.b32.xlu0 %v146, 60
    %v152 = vpop.permute.xlu0 %151
    %v155 = vadd.f32 %v124, %v150
    %v156 = vadd.f32 %v127, %v152
    %vm157 = vcmask 490496
    %158 = vst.msk [vmem:[#allocation4] sm:$0xff] %vm157, %v124
    %159 = vst.msk [vmem:[#allocation4 + $0x8] sm:$0xff] %vm157, %v127
    %162 = vrot.lane.b32.xlu0 %v155, 68
    %v163 = vpop.permute.xlu0 %162
    %164 = vrot.lane.b32.xlu0 %v156, 68
    %v165 = vpop.permute.xlu0 %164
    %168 = vst.msk [vmem:[#allocation10] sm:$0xff] %vm157, %v163
    %169 = vst.msk [vmem:[#allocation10 + $0x8] sm:$0xff] %vm157, %v165
    %s170 = scalar_lea.vmem %s0, 16
    %v171 = vld [vmem:[%s170] sm:$0xff]
    %v172 = vld [vmem:[%s170 + $0x8] sm:$0xff]
    %s173 = scalar_lea.vmem %s4, 16
    %v174 = vld [vmem:[%s173] sm:$0xff]
    %v175 = vld [vmem:[%s173 + $0x8] sm:$0xf]
    %s176 = scalar_lea.vmem %s5, 1
    %v177 = vld [vmem:[%s176] sm:$0x1]
    %v179 = vperm.slane %v177, 0
    %v182 = vsel %vm57, %v171, 0
    %v185 = vsel %vm57, %v172, 0
    %v188 = vsel %vm64, %v175, 0
    %190 = vmatpush.msra.mxu0 0.0
    %191 = vmatpush.msra.mxu0 0.0
    %192 = vmatpush.msra.mxu0 0.0
    %193 = vmatpush.msra.mxu0 0.0
    %194 = vmatpush.msra.mxu0 0.0
    %195 = vmatpush.msra.mxu0 0.0
    %196 = vmatpush.msra.mxu0 0.0
    %197 = vmatpush.msra.mxu0 0.0
    %198 = vmatpush.msra.mxu0 0.0
    %199 = vmatpush.msra.mxu0 0.0
    %200 = vmatpush.msra.mxu0 0.0
    %201 = vmatpush.msra.mxu0 0.0
    %202 = vmatpush.msra.mxu0 0.0
    %203 = vmatpush.msra.mxu0 0.0
    %204 = vmatpush.msra.mxu0 %v188
    %205 = vmatpush.msra.mxu0 %v174
    %206 = vmatmul.f32.gmra.mxu0 %v182
    %v207 = vpop.f32.mrf.mxu0
    %v208 = vadd.f32 %v179, %v207
    %209 = vmatmul.f32.gmra.mxu0 %v185
    %v210 = vpop.f32.mrf.mxu0
    %v211 = vadd.f32 %v179, %v210
    %212 = vdwg.mxu0
    %s213 = scalar_lea.vmem %s6, 32
    %v214 = vld [vmem:[%s213] sm:$0xff]
    %v215 = vld [vmem:[%s213 + $0x8] sm:$0xff]
    %v216 = vld [vmem:[%s213 + $0x10] sm:$0xff]
    %v217 = vld [vmem:[%s213 + $0x18] sm:$0xff]
    %s218 = scalar_lea.vmem %s7, 1
    %v219 = vld [vmem:[%s218] sm:$0x1]
    %v221 = vperm.slane %v219, 0
    %v224 = vsel %vm99, %v208, 0
    %v227 = vsel %vm99, %v211, 0
    %229 = vmatpush.msra.mxu0 0.0
    %230 = vmatpush.msra.mxu0 0.0
    %231 = vmatpush.msra.mxu0 0.0
    %232 = vmatpush.msra.mxu0 0.0
    %233 = vmatpush.msra.mxu0 0.0
    %234 = vmatpush.msra.mxu0 0.0
    %235 = vmatpush.msra.mxu0 0.0
    %236 = vmatpush.msra.mxu0 0.0
    %237 = vmatpush.msra.mxu0 0.0
    %238 = vmatpush.msra.mxu0 0.0
    %239 = vmatpush.msra.mxu0 0.0
    %240 = vmatpush.msra.mxu0 0.0
    %241 = vmatpush.msra.mxu0 %v217
    %242 = vmatpush.msra.mxu0 %v216
    %243 = vmatpush.msra.mxu0 %v215
    %244 = vmatpush.msra.mxu0 %v214
    %245 = vmatmul.f32.gmra.mxu0 %v224
    %v246 = vpop.f32.mrf.mxu0
    %v247 = vadd.f32 %v221, %v246
    %248 = vmatmul.f32.gmra.mxu0 %v227
    %v249 = vpop.f32.mrf.mxu0
    %v250 = vadd.f32 %v221, %v249
    %251 = vdwg.mxu0
    %252 = vset.pattern.permute.xlu0 10
    %253 = vperm.xlu0 %252, %v171
    %v254 = vpop.permute.xlu0 %253
    %256 = vset.pattern.permute.xlu0 10
    %257 = vperm.xlu0 %256, %v172
    %v258 = vpop.permute.xlu0 %257
    %260 = vset.pattern.permute.xlu0 11
    %261 = vperm.xlu0 %260, %v171
    %v262 = vpop.permute.xlu0 %261
    %264 = vset.pattern.permute.xlu0 11
    %265 = vperm.xlu0 %264, %v172
    %v266 = vpop.permute.xlu0 %265
    %v268 = vsel %vm48, %v254, %v262
    %v269 = vsel %vm48, %v258, %v266
    %272 = vrot.lane.b32.xlu0 %v268, 60
    %v273 = vpop.permute.xlu0 %272
    %274 = vrot.lane.b32.xlu0 %v269, 60
    %v275 = vpop.permute.xlu0 %274
    %v278 = vadd.f32 %v247, %v273
    %v279 = vadd.f32 %v250, %v275
    %280 = vst.msk [vmem:[#allocation6] sm:$0xff] %vm157, %v247
    %281 = vst.msk [vmem:[#allocation6 + $0x8] sm:$0xff] %vm157, %v250
    %284 = vrot.lane.b32.xlu0 %v278, 68
    %v285 = vpop.permute.xlu0 %284
    %286 = vrot.lane.b32.xlu0 %v279, 68
    %v287 = vpop.permute.xlu0 %286
    %290 = vst.msk [vmem:[#allocation12] sm:$0xff] %vm157, %v285
    %291 = vst.msk [vmem:[#allocation12 + $0x8] sm:$0xff] %vm157, %v287
    %s292 = scalar_lea.vmem %s0, 32
    %v293 = vld [vmem:[%s292] sm:$0xff]
    %v294 = vld [vmem:[%s292 + $0x8] sm:$0xff]
    %s295 = scalar_lea.vmem %s4, 32
    %v296 = vld [vmem:[%s295] sm:$0xff]
    %v297 = vld [vmem:[%s295 + $0x8] sm:$0xf]
    %s298 = scalar_lea.vmem %s5, 2
    %v299 = vld [vmem:[%s298] sm:$0x1]
    %v301 = vperm.slane %v299, 0
    %v304 = vsel %vm57, %v293, 0
    %v307 = vsel %vm57, %v294, 0
    %v310 = vsel %vm64, %v297, 0
    %312 = vmatpush.msra.mxu0 0.0
    %313 = vmatpush.msra.mxu0 0.0
    %314 = vmatpush.msra.mxu0 0.0
    %315 = vmatpush.msra.mxu0 0.0
    %316 = vmatpush.msra.mxu0 0.0
    %317 = vmatpush.msra.mxu0 0.0
    %318 = vmatpush.msra.mxu0 0.0
    %319 = vmatpush.msra.mxu0 0.0
    %320 = vmatpush.msra.mxu0 0.0
    %321 = vmatpush.msra.mxu0 0.0
    %322 = vmatpush.msra.mxu0 0.0
    %323 = vmatpush.msra.mxu0 0.0
    %324 = vmatpush.msra.mxu0 0.0
    %325 = vmatpush.msra.mxu0 0.0
    %326 = vmatpush.msra.mxu0 %v310
    %327 = vmatpush.msra.mxu0 %v296
    %328 = vmatmul.f32.gmra.mxu0 %v304
    %v329 = vpop.f32.mrf.mxu0
    %v330 = vadd.f32 %v301, %v329
    %331 = vmatmul.f32.gmra.mxu0 %v307
    %v332 = vpop.f32.mrf.mxu0
    %v333 = vadd.f32 %v301, %v332
    %334 = vdwg.mxu0
    %s335 = scalar_lea.vmem %s6, 64
    %v336 = vld [vmem:[%s335] sm:$0xff]
    %v337 = vld [vmem:[%s335 + $0x8] sm:$0xff]
    %v338 = vld [vmem:[%s335 + $0x10] sm:$0xff]
    %v339 = vld [vmem:[%s335 + $0x18] sm:$0xff]
    %s340 = scalar_lea.vmem %s7, 2
    %v341 = vld [vmem:[%s340] sm:$0x1]
    %v343 = vperm.slane %v341, 0
    %v346 = vsel %vm99, %v330, 0
    %v349 = vsel %vm99, %v333, 0
    %351 = vmatpush.msra.mxu0 0.0
    %352 = vmatpush.msra.mxu0 0.0
    %353 = vmatpush.msra.mxu0 0.0
    %354 = vmatpush.msra.mxu0 0.0
    %355 = vmatpush.msra.mxu0 0.0
    %356 = vmatpush.msra.mxu0 0.0
    %357 = vmatpush.msra.mxu0 0.0
    %358 = vmatpush.msra.mxu0 0.0
    %359 = vmatpush.msra.mxu0 0.0
    %360 = vmatpush.msra.mxu0 0.0
    %361 = vmatpush.msra.mxu0 0.0
    %362 = vmatpush.msra.mxu0 0.0
    %363 = vmatpush.msra.mxu0 %v339
    %364 = vmatpush.msra.mxu0 %v338
    %365 = vmatpush.msra.mxu0 %v337
    %366 = vmatpush.msra.mxu0 %v336
    %367 = vmatmul.f32.gmra.mxu0 %v346
    %v368 = vpop.f32.mrf.mxu0
    %v369 = vadd.f32 %v343, %v368
    %370 = vmatmul.f32.gmra.mxu0 %v349
    %v371 = vpop.f32.mrf.mxu0
    %v372 = vadd.f32 %v343, %v371
    %373 = vdwg.mxu0
    %374 = vset.pattern.permute.xlu0 10
    %375 = vperm.xlu0 %374, %v293
    %v376 = vpop.permute.xlu0 %375
    %378 = vset.pattern.permute.xlu0 10
    %379 = vperm.xlu0 %378, %v294
    %v380 = vpop.permute.xlu0 %379
    %382 = vset.pattern.permute.xlu0 11
    %383 = vperm.xlu0 %382, %v293
    %v384 = vpop.permute.xlu0 %383
    %386 = vset.pattern.permute.xlu0 11
    %387 = vperm.xlu0 %386, %v294
    %v388 = vpop.permute.xlu0 %387
    %v390 = vsel %vm48, %v376, %v384
    %v391 = vsel %vm48, %v380, %v388
    %394 = vrot.lane.b32.xlu0 %v390, 60
    %v395 = vpop.permute.xlu0 %394
    %396 = vrot.lane.b32.xlu0 %v391, 60
    %v397 = vpop.permute.xlu0 %396
    %v400 = vadd.f32 %v369, %v395
    %v401 = vadd.f32 %v372, %v397
    %402 = vst.msk [vmem:[#allocation7] sm:$0xff] %vm157, %v369
    %403 = vst.msk [vmem:[#allocation7 + $0x8] sm:$0xff] %vm157, %v372
    %406 = vrot.lane.b32.xlu0 %v400, 68
    %v407 = vpop.permute.xlu0 %406
    %408 = vrot.lane.b32.xlu0 %v401, 68
    %v409 = vpop.permute.xlu0 %408
    %412 = vst.msk [vmem:[#allocation13] sm:$0xff] %vm157, %v407
    %413 = vst.msk [vmem:[#allocation13 + $0x8] sm:$0xff] %vm157, %v409
    %v414 = vld [vmem:[%s3] sm:$0xff]
    %v415 = vld [vmem:[%s3 + $0x8] sm:$0xff]
    %v416 = vld [vmem:[%s3 + $0x10] sm:$0xff]
    %v417 = vld [vmem:[%s3 + $0x18] sm:$0xff]
    %v418 = vld [vmem:[%s3 + $0x20] sm:$0xff]
    %v419 = vld [vmem:[%s3 + $0x28] sm:$0xff]
    %421 = vset.pattern.permute.xlu0 0
    %422 = vperm.xlu0 %421, %v414
    %v423 = vpop.permute.xlu0 %422
    %426 = vset.pattern.permute.xlu0 0
    %427 = vperm.xlu0 %426, %v415
    %v428 = vpop.permute.xlu0 %427
    %431 = vset.pattern.permute.xlu0 0
    %432 = vperm.xlu0 %431, %v416
    %v433 = vpop.permute.xlu0 %432
    %436 = vset.pattern.permute.xlu0 0
    %437 = vperm.xlu0 %436, %v417
    %v438 = vpop.permute.xlu0 %437
    %441 = vset.pattern.permute.xlu0 0
    %442 = vperm.xlu0 %441, %v418
    %v443 = vpop.permute.xlu0 %442
    %446 = vset.pattern.permute.xlu0 0
    %447 = vperm.xlu0 %446, %v419
    %v448 = vpop.permute.xlu0 %447
    %450 = vset.pattern.permute.xlu0 3
    %451 = vperm.xlu0 %450, %v414
    %v452 = vpop.permute.xlu0 %451
    %454 = vset.pattern.permute.xlu0 3
    %455 = vperm.xlu0 %454, %v415
    %v456 = vpop.permute.xlu0 %455
    %458 = vset.pattern.permute.xlu0 3
    %459 = vperm.xlu0 %458, %v416
    %v460 = vpop.permute.xlu0 %459
    %462 = vset.pattern.permute.xlu0 3
    %463 = vperm.xlu0 %462, %v417
    %v464 = vpop.permute.xlu0 %463
    %466 = vset.pattern.permute.xlu0 3
    %467 = vperm.xlu0 %466, %v418
    %v468 = vpop.permute.xlu0 %467
    %470 = vset.pattern.permute.xlu0 3
    %471 = vperm.xlu0 %470, %v419
    %v472 = vpop.permute.xlu0 %471
    %v474 = vsel %vm48, %v423, %v452
    %v475 = vsel %vm48, %v428, %v456
    %v476 = vsel %vm48, %v433, %v460
    %v477 = vsel %vm48, %v438, %v464
    %v478 = vsel %vm48, %v443, %v468
    %v479 = vsel %vm48, %v448, %v472
    %480 = vset.pattern.permute.xlu0 1
    %481 = vperm.xlu0 %480, %v414
    %v482 = vpop.permute.xlu0 %481
    %484 = vset.pattern.permute.xlu0 1
    %485 = vperm.xlu0 %484, %v415
    %v486 = vpop.permute.xlu0 %485
    %488 = vset.pattern.permute.xlu0 1
    %489 = vperm.xlu0 %488, %v416
    %v490 = vpop.permute.xlu0 %489
    %492 = vset.pattern.permute.xlu0 1
    %493 = vperm.xlu0 %492, %v417
    %v494 = vpop.permute.xlu0 %493
    %496 = vset.pattern.permute.xlu0 1
    %497 = vperm.xlu0 %496, %v418
    %v498 = vpop.permute.xlu0 %497
    %500 = vset.pattern.permute.xlu0 1
    %501 = vperm.xlu0 %500, %v419
    %v502 = vpop.permute.xlu0 %501
    %504 = vset.pattern.permute.xlu0 2
    %505 = vperm.xlu0 %504, %v414
    %v506 = vpop.permute.xlu0 %505
    %508 = vset.pattern.permute.xlu0 2
    %509 = vperm.xlu0 %508, %v415
    %v510 = vpop.permute.xlu0 %509
    %512 = vset.pattern.permute.xlu0 2
    %513 = vperm.xlu0 %512, %v416
    %v514 = vpop.permute.xlu0 %513
    %516 = vset.pattern.permute.xlu0 2
    %517 = vperm.xlu0 %516, %v417
    %v518 = vpop.permute.xlu0 %517
    %520 = vset.pattern.permute.xlu0 2
    %521 = vperm.xlu0 %520, %v418
    %v522 = vpop.permute.xlu0 %521
    %524 = vset.pattern.permute.xlu0 2
    %525 = vperm.xlu0 %524, %v419
    %v526 = vpop.permute.xlu0 %525
    %v528 = vsel %vm48, %v482, %v506
    %v529 = vsel %vm48, %v486, %v510
    %v530 = vsel %vm48, %v490, %v514
    %v531 = vsel %vm48, %v494, %v518
    %v532 = vsel %vm48, %v498, %v522
    %v533 = vsel %vm48, %v502, %v526
    %534 = vset.pattern.permute.xlu0 4
    %535 = vperm.xlu0 %534, %v414
    %v536 = vpop.permute.xlu0 %535
    %538 = vset.pattern.permute.xlu0 4
    %539 = vperm.xlu0 %538, %v415
    %v540 = vpop.permute.xlu0 %539
    %542 = vset.pattern.permute.xlu0 4
    %543 = vperm.xlu0 %542, %v416
    %v544 = vpop.permute.xlu0 %543
    %546 = vset.pattern.permute.xlu0 4
    %547 = vperm.xlu0 %546, %v417
    %v548 = vpop.permute.xlu0 %547
    %550 = vset.pattern.permute.xlu0 4
    %551 = vperm.xlu0 %550, %v418
    %v552 = vpop.permute.xlu0 %551
    %554 = vset.pattern.permute.xlu0 4
    %555 = vperm.xlu0 %554, %v419
    %v556 = vpop.permute.xlu0 %555
    %558 = vset.pattern.permute.xlu0 5
    %559 = vperm.xlu0 %558, %v414
    %v560 = vpop.permute.xlu0 %559
    %562 = vset.pattern.permute.xlu0 5
    %563 = vperm.xlu0 %562, %v415
    %v564 = vpop.permute.xlu0 %563
    %566 = vset.pattern.permute.xlu0 5
    %567 = vperm.xlu0 %566, %v416
    %v568 = vpop.permute.xlu0 %567
    %570 = vset.pattern.permute.xlu0 5
    %571 = vperm.xlu0 %570, %v417
    %v572 = vpop.permute.xlu0 %571
    %574 = vset.pattern.permute.xlu0 5
    %575 = vperm.xlu0 %574, %v418
    %v576 = vpop.permute.xlu0 %575
    %578 = vset.pattern.permute.xlu0 5
    %579 = vperm.xlu0 %578, %v419
    %v580 = vpop.permute.xlu0 %579
    %v582 = vsel %vm48, %v536, %v560
    %v583 = vsel %vm48, %v540, %v564
    %v584 = vsel %vm48, %v544, %v568
    %v585 = vsel %vm48, %v548, %v572
    %v586 = vsel %vm48, %v552, %v576
    %v587 = vsel %vm48, %v556, %v580
    %v588 = vld [vmem:[%s8] sm:$0xff]
    %v589 = vld [vmem:[%s8 + $0x8] sm:$0xff]
    %v590 = vld [vmem:[%s8 + $0x10] sm:$0xff]
    %v591 = vld [vmem:[%s8 + $0x18] sm:$0xff]
    %v592 = vld [vmem:[%s8 + $0x20] sm:$0xff]
    %v593 = vld [vmem:[%s8 + $0x28] sm:$0xff]
    %v594 = vld [vmem:[%s8 + $0x30] sm:$0xff]
    %v595 = vld [vmem:[%s8 + $0x38] sm:$0xf]
    %v596 = vsel %vm157, %v163, 0
    %v598 = vsel %vm157, %v285, 0
    %v600 = vsel %vm157, %v407, 0
    %v602 = vsel %vm157, %v165, 0
    %v604 = vsel %vm157, %v287, 0
    %v606 = vsel %vm157, %v409, 0
    %v609 = vsel %vm64, %v595, 0
    %611 = vmatpush.msra.mxu0 0.0
    %612 = vmatpush.msra.mxu0 0.0
    %613 = vmatpush.msra.mxu0 0.0
    %614 = vmatpush.msra.mxu0 0.0
    %615 = vmatpush.msra.mxu0 0.0
    %616 = vmatpush.msra.mxu0 0.0
    %617 = vmatpush.msra.mxu0 0.0
    %618 = vmatpush.msra.mxu0 0.0
    %619 = vmatpush.msra.mxu0 %v609
    %620 = vmatpush.msra.mxu0 %v594
    %621 = vmatpush.msra.mxu0 %v593
    %622 = vmatpush.msra.mxu0 %v592
    %623 = vmatpush.msra.mxu0 %v591
    %624 = vmatpush.msra.mxu0 %v590
    %625 = vmatpush.msra.mxu0 %v589
    %626 = vmatpush.msra.mxu0 %v588
    %627 = vmatmul.f32.gmra.mxu0 %v596
    %v628 = vpop.f32.mrf.mxu0
    %v629 = vadd.f32 0.0, %v628
    %630 = vmatmul.f32.gmra.mxu0 %v598
    %v631 = vpop.f32.mrf.mxu0
    %v632 = vadd.f32 0.0, %v631
    %633 = vmatmul.f32.gmra.mxu0 %v600
    %v634 = vpop.f32.mrf.mxu0
    %v635 = vadd.f32 0.0, %v634
    %636 = vmatmul.f32.gmra.mxu0 %v602
    %v637 = vpop.f32.mrf.mxu0
    %v638 = vadd.f32 0.0, %v637
    %639 = vmatmul.f32.gmra.mxu0 %v604
    %v640 = vpop.f32.mrf.mxu0
    %v641 = vadd.f32 0.0, %v640
    %642 = vmatmul.f32.gmra.mxu0 %v606
    %v643 = vpop.f32.mrf.mxu0
    %v644 = vadd.f32 0.0, %v643
    %645 = vdwg.mxu0
    %v646 = vmul.f32 %v474, %v163
    %v647 = vmul.f32 %v475, %v285
    %v648 = vmul.f32 %v476, %v407
    %v649 = vmul.f32 %v477, %v165
    %v650 = vmul.f32 %v478, %v287
    %v651 = vmul.f32 %v479, %v409
    %v652 = vmul.f32 %v528, %v629
    %v653 = vmul.f32 %v529, %v632
    %v654 = vmul.f32 %v530, %v635
    %v655 = vmul.f32 %v531, %v638
    %v656 = vmul.f32 %v532, %v641
    %v657 = vmul.f32 %v533, %v644
    %v658 = vadd.f32 %v646, %v652
    %v659 = vadd.f32 %v647, %v653
    %v660 = vadd.f32 %v648, %v654
    %v661 = vadd.f32 %v649, %v655
    %v662 = vadd.f32 %v650, %v656
    %v663 = vadd.f32 %v651, %v657
    %v664 = vadd.f32 %v658, %v582
    %v665 = vadd.f32 %v659, %v583
    %v666 = vadd.f32 %v660, %v584
    %v667 = vadd.f32 %v661, %v585
    %v668 = vadd.f32 %v662, %v586
    %v669 = vadd.f32 %v663, %v587
    %v670 = vld [vmem:[%s2] sm:$0xff]
    %vm671 = vcmask 195584
    %v673 = vsel %vm671, %v670, 0
    %675 = vmatpush.msra.mxu0 0.0
    %676 = vmatpush.msra.mxu0 0.0
    %677 = vmatpush.msra.mxu0 0.0
    %678 = vmatpush.msra.mxu0 0.0
    %679 = vmatpush.msra.mxu0 0.0
    %680 = vmatpush.msra.mxu0 0.0
    %681 = vmatpush.msra.mxu0 0.0
    %682 = vmatpush.msra.mxu0 0.0
    %683 = vmatpush.msra.mxu0 0.0
    %684 = vmatpush.msra.mxu0 0.0
    %685 = vmatpush.msra.mxu0 0.0
    %686 = vmatpush.msra.mxu0 0.0
    %687 = vmatpush.msra.mxu0 0.0
    %688 = vmatpush.msra.mxu0 %v666
    %689 = vmatpush.msra.mxu0 %v665
    %690 = vmatpush.msra.mxu0 %v664
    %691 = vmatmul.f32.gmra.mxu0 %v673
    %v692 = vpop.f32.mrf.mxu0
    %v693 = vadd.f32 0.0, %v692
    %694 = vdwg.mxu0
    %v695 = vld [vmem:[%s1] sm:$0xff]
    %697 = vrot.lane.b32.xlu0 %v695, 118
    %v698 = vpop.permute.xlu0 %697
    %701 = vrot.lane.b32.xlu0 %v693, 2
    %v702 = vpop.permute.xlu0 %701
    %vm704 = vcmask 15360
    %v705 = vsel %vm704, %v698, %v702
    %v706 = vsub.f32 %v693, %v705
    %707 = vst.msk [vmem:[#allocation9] sm:$0xff] %vm157, %v693
    %708 = vst.msk [vmem:[#allocation2] sm:$0xff] %vm157, %v706
    %s709 = scalar_lea.vmem %s2, 8
    %v710 = vld [vmem:[%s709] sm:$0xff]
    %v712 = vsel %vm671, %v710, 0
    %714 = vmatpush.msra.mxu0 0.0
    %715 = vmatpush.msra.mxu0 0.0
    %716 = vmatpush.msra.mxu0 0.0
    %717 = vmatpush.msra.mxu0 0.0
    %718 = vmatpush.msra.mxu0 0.0
    %719 = vmatpush.msra.mxu0 0.0
    %720 = vmatpush.msra.mxu0 0.0
    %721 = vmatpush.msra.mxu0 0.0
    %722 = vmatpush.msra.mxu0 0.0
    %723 = vmatpush.msra.mxu0 0.0
    %724 = vmatpush.msra.mxu0 0.0
    %725 = vmatpush.msra.mxu0 0.0
    %726 = vmatpush.msra.mxu0 0.0
    %727 = vmatpush.msra.mxu0 %v669
    %728 = vmatpush.msra.mxu0 %v668
    %729 = vmatpush.msra.mxu0 %v667
    %730 = vmatmul.f32.gmra.mxu0 %v712
    %v731 = vpop.f32.mrf.mxu0
    %v732 = vadd.f32 0.0, %v731
    %733 = vdwg.mxu0
    %s734 = scalar_lea.vmem %s1, 8
    %v735 = vld [vmem:[%s734] sm:$0xff]
    %737 = vrot.lane.b32.xlu0 %v735, 118
    %v738 = vpop.permute.xlu0 %737
    %741 = vrot.lane.b32.xlu0 %v732, 2
    %v742 = vpop.permute.xlu0 %741
    %v744 = vsel %vm704, %v738, %v742
    %v745 = vsub.f32 %v732, %v744
    %s746 = scalar_lea.vmem [#allocation9], 8
    %747 = vst.msk [vmem:[%s746] sm:$0xff] %vm157, %v732
    %s748 = scalar_lea.vmem [#allocation2], 8
    %749 = vst.msk [vmem:[%s748] sm:$0xff] %vm157, %v745
    // Predicated region
    $region38: #{nmp_encoder_forward.1} parent=1 // pred_check
      _
    $region39: #{nmp_encoder_forward.1} parent=1 // pred_check_branch
      %751 = sbr.rel (0) target = $region41
    $region40: #{nmp_encoder_forward.1} parent=1 // pred_region
      %753 = vsyncadd [#allocation3], 0
      %s754 = sshll.u32 [#allocation2], 4
      %s755 = int_to_ptr.vmem [resolvable:$true] %s754
      %s756 = sshll.u32 %s9, 4
      %s757 = int_to_ptr.hbm [resolvable:$true] %s756
      %762 = dma.vmem_to_hbm [thread:$0]  %s755, 256, %s757, [#allocation3], 128, 128, 8
    $region41: #{nmp_encoder_forward.1} parent=1 // pred_fallthru
      _
    // Predicated region
    $region42: #{nmp_encoder_forward.1} parent=1 // pred_check
      _
    $region43: #{nmp_encoder_forward.1} parent=1 // pred_check_branch
      %764 = sbr.rel (0) target = $region45
    $region44: #{nmp_encoder_forward.1} parent=1 // pred_region
      %766 = vsyncadd [#allocation5], 0
      %s767 = sshll.u32 [#allocation4], 4
      %s768 = int_to_ptr.vmem [resolvable:$true] %s767
      %s769 = sshll.u32 %s10, 4
      %s770 = int_to_ptr.hbm [resolvable:$true] %s769
      %775 = dma.vmem_to_hbm [thread:$0]  %s768, 256, %s770, [#allocation5], 128, 128, 8
    $region45: #{nmp_encoder_forward.1} parent=1 // pred_fallthru
      _
    // Predicated region
    $region46: #{nmp_encoder_forward.1} parent=1 // pred_check
      _
    $region47: #{nmp_encoder_forward.1} parent=1 // pred_check_branch
      %777 = sbr.rel (0) target = $region49
    $region48: #{nmp_encoder_forward.1} parent=1 // pred_region
      %779 = vsyncadd [#allocation5], 0
      %s780 = sshll.u32 [#allocation6], 4
      %s781 = int_to_ptr.vmem [resolvable:$true] %s780
      %s782 = sshll.u32 %s11, 4
      %s783 = int_to_ptr.hbm [resolvable:$true] %s782
      %788 = dma.vmem_to_hbm [thread:$0]  %s781, 256, %s783, [#allocation5], 128, 128, 8
    $region49: #{nmp_encoder_forward.1} parent=1 // pred_fallthru
      _
    // Predicated region
    $region50: #{nmp_encoder_forward.1} parent=1 // pred_check
      _
    $region51: #{nmp_encoder_forward.1} parent=1 // pred_check_branch
      %790 = sbr.rel (0) target = $region53
    $region52: #{nmp_encoder_forward.1} parent=1 // pred_region
      %792 = vsyncadd [#allocation8], 0
      %s793 = sshll.u32 [#allocation7], 4
      %s794 = int_to_ptr.vmem [resolvable:$true] %s793
      %s795 = sshll.u32 %s12, 4
      %s796 = int_to_ptr.hbm [resolvable:$true] %s795
      %801 = dma.vmem_to_hbm [thread:$0]  %s794, 256, %s796, [#allocation8], 128, 128, 8
    $region53: #{nmp_encoder_forward.1} parent=1 // pred_fallthru
      _
    // Predicated region
    $region54: #{nmp_encoder_forward.1} parent=1 // pred_check
      _
    $region55: #{nmp_encoder_forward.1} parent=1 // pred_check_branch
      %803 = sbr.rel (0) target = $region57
    $region56: #{nmp_encoder_forward.1} parent=1 // pred_region
      %805 = vsyncadd [#allocation8], 0
      %s806 = sshll.u32 [#allocation9], 4
      %s807 = int_to_ptr.vmem [resolvable:$true] %s806
      %s808 = sshll.u32 %s13, 4
      %s809 = int_to_ptr.hbm [resolvable:$true] %s808
      %814 = dma.vmem_to_hbm [thread:$0]  %s807, 256, %s809, [#allocation8], 128, 128, 8
    $region57: #{nmp_encoder_forward.1} parent=1 // pred_fallthru
      _
    // Predicated region
    $region58: #{nmp_encoder_forward.1} parent=1 // pred_check
      _
    $region59: #{nmp_encoder_forward.1} parent=1 // pred_check_branch
      %816 = sbr.rel (0) target = $region61
    $region60: #{nmp_encoder_forward.1} parent=1 // pred_region
      %818 = vsyncadd [#allocation11], 0
      %s819 = sshll.u32 [#allocation10], 4
      %s820 = int_to_ptr.vmem [resolvable:$true] %s819
      %s821 = sshll.u32 %s14, 4
      %s822 = int_to_ptr.hbm [resolvable:$true] %s821
      %827 = dma.vmem_to_hbm [thread:$0]  %s820, 256, %s822, [#allocation11], 128, 128, 8
    $region61: #{nmp_encoder_forward.1} parent=1 // pred_fallthru
      _
    // Predicated region
    $region62: #{nmp_encoder_forward.1} parent=1 // pred_check
      _
    $region63: #{nmp_encoder_forward.1} parent=1 // pred_check_branch
      %829 = sbr.rel (0) target = $region65
    $region64: #{nmp_encoder_forward.1} parent=1 // pred_region
      %831 = vsyncadd [#allocation11], 0
      %s832 = sshll.u32 [#allocation12], 4
      %s833 = int_to_ptr.vmem [resolvable:$true] %s832
      %s834 = sshll.u32 %s15, 4
      %s835 = int_to_ptr.hbm [resolvable:$true] %s834
      %840 = dma.vmem_to_hbm [thread:$0]  %s833, 256, %s835, [#allocation11], 128, 128, 8
    $region65: #{nmp_encoder_forward.1} parent=1 // pred_fallthru
      _
    // Predicated region
    $region66: #{nmp_encoder_forward.1} parent=1 // pred_check
      _
    $region67: #{nmp_encoder_forward.1} parent=1 // pred_check_branch
      %842 = sbr.rel (0) target = $region69
    $region68: #{nmp_encoder_forward.1} parent=1 // pred_region
      %844 = vsyncadd [#allocation14], 0
      %s845 = sshll.u32 [#allocation13], 4
      %s846 = int_to_ptr.vmem [resolvable:$true] %s845
      %s847 = sshll.u32 %s16, 4
      %s848 = int_to_ptr.hbm [resolvable:$true] %s847
      %853 = dma.vmem_to_hbm [thread:$0]  %s846, 256, %s848, [#allocation14], 128, 128, 8
    $region69: #{nmp_encoder_forward.1} parent=1 // pred_fallthru
      _
    // Predicated region
    $region70: #{nmp_encoder_forward.1} parent=1 // pred_check
      _
    $region71: #{nmp_encoder_forward.1} parent=1 // pred_check_branch
      %855 = sbr.rel (0) target = $region73
    $region72: #{nmp_encoder_forward.1} parent=1 // pred_region
      %857 = dma.done [#allocation3], 256
    $region73: #{nmp_encoder_forward.1} parent=1 // pred_fallthru
      _
    // Predicated region
    $region74: #{nmp_encoder_forward.1} parent=1 // pred_check
      _
    $region75: #{nmp_encoder_forward.1} parent=1 // pred_check_branch
      %859 = sbr.rel (0) target = $region77
    $region76: #{nmp_encoder_forward.1} parent=1 // pred_region
      %861 = dma.done [#allocation5], 256
    $region77: #{nmp_encoder_forward.1} parent=1 // pred_fallthru
      _
    // Predicated region
    $region78: #{nmp_encoder_forward.1} parent=1 // pred_check
      _
    $region79: #{nmp_encoder_forward.1} parent=1 // pred_check_branch
      %863 = sbr.rel (0) target = $region81
    $region80: #{nmp_encoder_forward.1} parent=1 // pred_region
      %865 = dma.done [#allocation5], 256
    $region81: #{nmp_encoder_forward.1} parent=1 // pred_fallthru
      _
    // Predicated region
    $region82: #{nmp_encoder_forward.1} parent=1 // pred_check
      _
    $region83: #{nmp_encoder_forward.1} parent=1 // pred_check_branch
      %867 = sbr.rel (0) target = $region85
    $region84: #{nmp_encoder_forward.1} parent=1 // pred_region
      %869 = dma.done [#allocation8], 256
    $region85: #{nmp_encoder_forward.1} parent=1 // pred_fallthru
      _
    // Predicated region
    $region86: #{nmp_encoder_forward.1} parent=1 // pred_check
      _
    $region87: #{nmp_encoder_forward.1} parent=1 // pred_check_branch
      %871 = sbr.rel (0) target = $region89
    $region88: #{nmp_encoder_forward.1} parent=1 // pred_region
      %873 = dma.done [#allocation8], 256
    $region89: #{nmp_encoder_forward.1} parent=1 // pred_fallthru
      _
    // Predicated region
    $region90: #{nmp_encoder_forward.1} parent=1 // pred_check
      _
    $region91: #{nmp_encoder_forward.1} parent=1 // pred_check_branch
      %875 = sbr.rel (0) target = $region93
    $region92: #{nmp_encoder_forward.1} parent=1 // pred_region
      %877 = dma.done [#allocation11], 256
    $region93: #{nmp_encoder_forward.1} parent=1 // pred_fallthru
      _
    // Predicated region
    $region94: #{nmp_encoder_forward.1} parent=1 // pred_check
      _
    $region95: #{nmp_encoder_forward.1} parent=1 // pred_check_branch
      %879 = sbr.rel (0) target = $region97
    $region96: #{nmp_encoder_forward.1} parent=1 // pred_region
      %881 = dma.done [#allocation11], 256
    $region97: #{nmp_encoder_forward.1} parent=1 // pred_fallthru
      _
    // Predicated region
    $region98: #{nmp_encoder_forward.1} parent=1 // pred_check
      _
    $region99: #{nmp_encoder_forward.1} parent=1 // pred_check_branch
      %883 = sbr.rel (0) target = $region101
    $region100: #{nmp_encoder_forward.1} parent=1 // pred_region
      %885 = dma.done [#allocation14], 256
    $region101: #{nmp_encoder_forward.1} parent=1 // pred_fallthru
      _
    %886 = vsyncpa [#allocation3], 1
    %887 = vsyncpa [#allocation5], 1
    %888 = vsyncpa [#allocation8], 1
    %889 = vsyncpa [#allocation11], 1
    %890 = vsyncpa [#allocation14], 1

</llo_original>
